<compile_context>
chip_gen: v7x
topology: tpu7x:2x2x1
jax: 0.10.0
libtpu: 0.0.40
codegen_flags: <defaults>
</compile_context>

<pallas_src>
import functools

import jax
import jax.numpy as jnp
from jax.experimental import pallas as pl
from jax.experimental.pallas import tpu as pltpu


# ---------------------------------------------------------------------------
# Fused transformer kernel: one grid step = (batch element b, layer l)
# ---------------------------------------------------------------------------

def _block_kernel(x_ref, pos_ref, ctx_ref,
                  ln1g_ref, ln1b_ref, wqkv_ref, bqkv_ref, wout_ref, bout_ref,
                  ln2g_ref, ln2b_ref, wfc_ref, bfc_ref, wproj_ref, bproj_ref,
                  o_ref, x_scr,
                  *, n_heads, n_ctx, n_deep, eps):
    l = pl.program_id(1)
    n_layers = pl.num_programs(1)
    L, D = x_scr.shape
    Dh = D // n_heads
    scale = 1.0 / (Dh ** 0.5)

    # Layer 0: load residual stream (+ positional embedding) into VMEM scratch.
    @pl.when(l == 0)
    def _():
        x_scr[...] = x_ref[0] + pos_ref[...]

    # MaPLe: layers 1..n_deep replace tokens [1 : 1+n_ctx] with deep text ctx.
    if n_deep > 0:
        @pl.when(jnp.logical_and(l >= 1, l <= n_deep))
        def _():
            x_scr[1:1 + n_ctx, :] = ctx_ref[0]

    def _ln(v, g, b):                      # f32 layernorm (g, b: (1, D))
        mu = jnp.mean(v, axis=-1, keepdims=True)
        c = v - mu
        var = jnp.mean(c * c, axis=-1, keepdims=True)
        return c * jax.lax.rsqrt(var + eps) * g + b

    def _mm(a_f32, w_bf16, bias_f32):      # bf16 MXU matmul, f32 accumulate
        return jnp.dot(a_f32.astype(jnp.bfloat16), w_bf16,
                       preferred_element_type=jnp.float32) + bias_f32

    x = x_scr[...]                                         # (L, D) f32

    # ---- attention sublayer: LN1 -> QKV -> MHA -> out-proj -> +residual ----
    h = _ln(x, ln1g_ref[0], ln1b_ref[0])
    qkv = _mm(h, wqkv_ref[0], bqkv_ref[0])                 # (L, 3D) f32
    q = qkv[:, 0:D] * scale                                # fold 1/sqrt(Dh) into q
    k = qkv[:, D:2 * D]
    v = qkv[:, 2 * D:3 * D]

    # Causal mask built in-register (no HBM mask DMA).
    rows = jax.lax.broadcasted_iota(jnp.int32, (L, L), 0)
    cols = jax.lax.broadcasted_iota(jnp.int32, (L, L), 1)
    neg = jnp.where(cols > rows, jnp.float32(-1e30), jnp.float32(0.0))

    heads = []
    for hh in range(n_heads):                              # static unroll
        sl = slice(hh * Dh, (hh + 1) * Dh)
        qh = q[:, sl].astype(jnp.bfloat16)                 # (L, Dh)
        khT = k[:, sl].T.astype(jnp.bfloat16)              # (Dh, L)
        vh = v[:, sl].astype(jnp.bfloat16)                 # (L, Dh)
        s = jnp.dot(qh, khT, preferred_element_type=jnp.float32) + neg
        s = s - jnp.max(s, axis=-1, keepdims=True)
        p = jnp.exp(s)
        p = p * pl.reciprocal(jnp.sum(p, axis=-1, keepdims=True), approx=True)
        heads.append(jnp.dot(p.astype(jnp.bfloat16), vh,
                             preferred_element_type=jnp.float32))
    attn = jnp.concatenate(heads, axis=-1)                 # (L, D) lane-dense
    x = x + _mm(attn, wout_ref[0], bout_ref[0])

    # ---- MLP sublayer: LN2 -> FC -> QuickGELU -> proj -> +residual ----
    h = _ln(x, ln2g_ref[0], ln2b_ref[0])
    h = _mm(h, wfc_ref[0], bfc_ref[0])                     # (L, 4D) f32
    h = h * jax.nn.sigmoid(1.702 * h)                      # QuickGELU (f32)
    x = x + _mm(h, wproj_ref[0], bproj_ref[0])

    x_scr[...] = x

    @pl.when(l == n_layers - 1)
    def _():
        o_ref[0] = x.astype(o_ref.dtype)


def transformer_forward(x, pos_emb, ctx_stack, sp, *, n_heads, n_ctx, n_deep,
                        eps=1e-5):
    """x: (N, L, D) f32; pos_emb: (L, D); ctx_stack: (max(n_deep,1), n_ctx, D);
    sp: dict of per-layer weights stacked along a leading layer axis."""
    N, L, D = x.shape
    n_layers = sp["w_qkv"].shape[0]

    batch_map = lambda b, l: (b, 0, 0)
    layer_map = lambda b, l: (l, 0, 0)
    fixed_map = lambda b, l: (0, 0)
    hi = max(n_deep, 1) - 1
    ctx_map = lambda b, l: (jnp.maximum(jnp.minimum(l - 1, hi), 0), 0, 0)

    kernel = functools.partial(_block_kernel, n_heads=n_heads, n_ctx=n_ctx,
                               n_deep=n_deep, eps=eps)

    return pl.pallas_call(
        kernel,
        out_shape=jax.ShapeDtypeStruct((N, L, D), jnp.float32),
        grid_spec=pltpu.PrefetchScalarGridSpec(
            num_scalar_prefetch=0,
            grid=(N, n_layers),
            in_specs=[
                pl.BlockSpec((1, L, D), batch_map),          # x
                pl.BlockSpec((L, D), fixed_map),             # pos_emb
                pl.BlockSpec((1, n_ctx, D), ctx_map),        # deep ctx stack
                pl.BlockSpec((1, 1, D), layer_map),          # ln1_g
                pl.BlockSpec((1, 1, D), layer_map),          # ln1_b
                pl.BlockSpec((1, D, 3 * D), layer_map),      # w_qkv (bf16)
                pl.BlockSpec((1, 1, 3 * D), layer_map),      # b_qkv
                pl.BlockSpec((1, D, D), layer_map),          # w_out (bf16)
                pl.BlockSpec((1, 1, D), layer_map),          # b_out
                pl.BlockSpec((1, 1, D), layer_map),          # ln2_g
                pl.BlockSpec((1, 1, D), layer_map),          # ln2_b
                pl.BlockSpec((1, D, 4 * D), layer_map),      # w_fc (bf16)
                pl.BlockSpec((1, 1, 4 * D), layer_map),      # b_fc
                pl.BlockSpec((1, 4 * D, D), layer_map),      # w_proj (bf16)
                pl.BlockSpec((1, 1, D), layer_map),          # b_proj
            ],
            out_specs=pl.BlockSpec((1, L, D), batch_map),
            scratch_shapes=[pltpu.VMEM((L, D), jnp.float32)],   # resident residual
        ),
        compiler_params=pltpu.CompilerParams(
            dimension_semantics=("parallel", "arbitrary"),
            vmem_limit_bytes=48 * 1024 * 1024,   # fits v7x's 64 MiB VMEM budget
        ),
    )(x, pos_emb, ctx_stack,
      sp["ln1_g"], sp["ln1_b"], sp["w_qkv"], sp["b_qkv"],
      sp["w_out"], sp["b_out"], sp["ln2_g"], sp["ln2_b"],
      sp["w_fc"], sp["b_fc"], sp["w_proj"], sp["b_proj"])


# ---------------------------------------------------------------------------
# Fused ln_final + text_projection on the pooled EOT rows
# ---------------------------------------------------------------------------

def _pooled_head_kernel(x_ref, g_ref, b_ref, w_ref, o_ref, *, eps):
    v = x_ref[...].astype(jnp.float32)
    mu = jnp.mean(v, axis=-1, keepdims=True)
    c = v - mu
    var = jnp.mean(c * c, axis=-1, keepdims=True)
    h = c * jax.lax.rsqrt(var + eps) * g_ref[...] + b_ref[...]
    o_ref[...] = jnp.dot(h.astype(jnp.bfloat16), w_ref[...],
                         preferred_element_type=jnp.float32).astype(o_ref.dtype)


def pooled_ln_project(pooled, g, b, w_bf16, *, eps=1e-5):
    """pooled: (N, D); g, b: (1, D); w: (D, E) bf16 -> (N, E) f32."""
    N, D = pooled.shape
    E = w_bf16.shape[-1]
    tile_m = N if N <= 256 else 256
    return pl.pallas_call(
        functools.partial(_pooled_head_kernel, eps=eps),
        out_shape=jax.ShapeDtypeStruct((N, E), jnp.float32),
        grid_spec=pltpu.PrefetchScalarGridSpec(
            num_scalar_prefetch=0,
            grid=(pl.cdiv(N, tile_m),),
            in_specs=[
                pl.BlockSpec((tile_m, D), lambda i: (i, 0)),
                pl.BlockSpec((1, D), lambda i: (0, 0)),
                pl.BlockSpec((1, D), lambda i: (0, 0)),
                pl.BlockSpec((D, E), lambda i: (0, 0)),
            ],
            out_specs=pl.BlockSpec((tile_m, E), lambda i: (i, 0)),
        ),
        compiler_params=pltpu.CompilerParams(
            dimension_semantics=("parallel",)),
    )(pooled, g, b, w_bf16)


# ---------------------------------------------------------------------------
# TextEncoder.forward (MaPLe) semantics
# ---------------------------------------------------------------------------

def text_encoder_forward(prompts, tokenized_prompts, compound_prompts_deeper_text,
                         params, *, n_heads, n_ctx):
    N, L, D = prompts.shape
    n_deep = len(compound_prompts_deeper_text)
    if n_deep > 0:
        ctx_stack = jnp.stack(
            [c.astype(jnp.float32) for c in compound_prompts_deeper_text], axis=0)
    else:
        ctx_stack = jnp.zeros((1, n_ctx, D), jnp.float32)

    # transformer([x + pos, compound_prompts_deeper_text, 0]); pos-add is fused
    # into the kernel at layer 0.  (The (L,N,D) permutes in torch are just the
    # nn.MultiheadAttention calling convention; math is identical in (N,L,D).)
    x = transformer_forward(prompts.astype(jnp.float32), params["pos_emb"],
                            ctx_stack, params["stacked"],
                            n_heads=n_heads, n_ctx=n_ctx, n_deep=n_deep)

    # x[arange(N), argmax(tokenized)] ; ln_final (row-wise, commutes with the
    # gather) + @ text_projection are fused in one small Pallas kernel.
    eot = jnp.argmax(tokenized_prompts, axis=-1)            # (N,)
    pooled = x[jnp.arange(N), eot]                          # (N, D) JAX glue gather
    return pooled_ln_project(pooled, params["lnf_g"], params["lnf_b"],
                             params["text_projection"])


# ---------------------------------------------------------------------------
# Deterministic parameter construction (weights stacked per layer, bf16 GEMMs)
# ---------------------------------------------------------------------------

def init_params(key, *, n_layers, L, D, E):
    keys = jax.random.split(key, 10)

    def nrm(k, shape, scale=0.02, dtype=jnp.float32):
        return (scale * jax.random.normal(k, shape)).astype(dtype)

    stacked = dict(
        ln1_g=jnp.ones((n_layers, 1, D), jnp.float32),
        ln1_b=jnp.zeros((n_layers, 1, D), jnp.float32),
        w_qkv=nrm(keys[0], (n_layers, D, 3 * D), dtype=jnp.bfloat16),  # x @ W (torch W^T)
        b_qkv=nrm(keys[1], (n_layers, 1, 3 * D)),
        w_out=nrm(keys[2], (n_layers, D, D), dtype=jnp.bfloat16),
        b_out=nrm(keys[3], (n_layers, 1, D)),
        ln2_g=jnp.ones((n_layers, 1, D), jnp.float32),
        ln2_b=jnp.zeros((n_layers, 1, D), jnp.float32),
        w_fc=nrm(keys[4], (n_layers, D, 4 * D), dtype=jnp.bfloat16),
        b_fc=nrm(keys[5], (n_layers, 1, 4 * D)),
        w_proj=nrm(keys[6], (n_layers, 4 * D, D), dtype=jnp.bfloat16),
        b_proj=nrm(keys[7], (n_layers, 1, D)),
    )
    return dict(
        pos_emb=nrm(keys[8], (L, D)),
        lnf_g=jnp.ones((1, D), jnp.float32),
        lnf_b=jnp.zeros((1, D), jnp.float32),
        text_projection=nrm(keys[9], (D, E), dtype=jnp.bfloat16),
        stacked=stacked,
    )


# ---------------------------------------------------------------------------
# main
# ---------------------------------------------------------------------------

if __name__ == "__main__":
    key = jax.random.PRNGKey(0)
    k_p, k_c, k_par = jax.random.split(key, 3)

    N, L, D, E = 2, 8, 32, 16        # batch, seq, transformer width, embed dim
    n_heads, n_layers, n_ctx = 4, 2, 2

    # prompts: (N, L, D) learned prompt embeddings assembled upstream
    prompts = (0.02 * jax.random.normal(k_p, (N, L, D))).astype(jnp.float32)

    # compound_prompts_deeper_text: list of (n_ctx, D), one per deeper layer
    compound_prompts_deeper_text = [
        (0.02 * jax.random.normal(k_c, (n_ctx, D))).astype(jnp.float32)
    ]

    # tokenized_prompts: (N, L) int token ids; EOT (largest id) marks pooling pos
    tokenized_prompts = jnp.array(
        [[49406, 320, 321, 322, 323, 49407, 0, 0],
         [49406, 330, 331, 332, 333, 334, 335, 49407]], dtype=jnp.int32)

    params = init_params(k_par, n_layers=n_layers, L=L, D=D, E=E)

    fwd = jax.jit(functools.partial(text_encoder_forward,
                                    n_heads=n_heads, n_ctx=n_ctx))
    out = fwd(prompts, tokenized_prompts, compound_prompts_deeper_text, params)
    out = jax.block_until_ready(out)

    assert out.shape == (N, E), out.shape
    assert bool(jnp.all(jnp.isfinite(out)))
    print("KERNEL_OK")
</pallas_src>

<mosaic_0001>
module attributes {stable_mosaic.version = 11 : i64} {
  func.func @_block_kernel(%arg0: i32, %arg1: i32, %arg2: memref<1x8x32xf32, #tpu.memory_space<vmem>>, %arg3: memref<8x32xf32, #tpu.memory_space<vmem>>, %arg4: memref<1x2x32xf32, #tpu.memory_space<vmem>>, %arg5: memref<1x1x32xf32, #tpu.memory_space<vmem>>, %arg6: memref<1x1x32xf32, #tpu.memory_space<vmem>>, %arg7: memref<1x32x96xbf16, #tpu.memory_space<vmem>>, %arg8: memref<1x1x96xf32, #tpu.memory_space<vmem>>, %arg9: memref<1x32x32xbf16, #tpu.memory_space<vmem>>, %arg10: memref<1x1x32xf32, #tpu.memory_space<vmem>>, %arg11: memref<1x1x32xf32, #tpu.memory_space<vmem>>, %arg12: memref<1x1x32xf32, #tpu.memory_space<vmem>>, %arg13: memref<1x32x128xbf16, #tpu.memory_space<vmem>>, %arg14: memref<1x1x128xf32, #tpu.memory_space<vmem>>, %arg15: memref<1x128x32xbf16, #tpu.memory_space<vmem>>, %arg16: memref<1x1x32xf32, #tpu.memory_space<vmem>>, %arg17: memref<1x8x32xf32, #tpu.memory_space<vmem>>, %arg18: memref<8x32xf32, #tpu.memory_space<vmem>>) attributes {dimension_semantics = [#tpu.dimension_semantics<parallel>, #tpu.dimension_semantics<arbitrary>], iteration_bounds = array<i64: 2, 2>, scalar_prefetch = 0 : i64, scratch_operands = 1 : i64, tpu.core_type = #tpu.core_type<tc>, window_params = [{transform_indices = @transform_0, window_bounds = array<i64: 1, 8, 32>}, {pipeline_mode = #tpu.pipeline_mode<synchronous>, transform_indices = @transform_1, window_bounds = array<i64: 8, 32>}, {transform_indices = @transform_2, window_bounds = array<i64: 1, 2, 32>}, {transform_indices = @transform_3, window_bounds = array<i64: 1, 1, 32>}, {transform_indices = @transform_4, window_bounds = array<i64: 1, 1, 32>}, {transform_indices = @transform_5, window_bounds = array<i64: 1, 32, 96>}, {transform_indices = @transform_6, window_bounds = array<i64: 1, 1, 96>}, {transform_indices = @transform_7, window_bounds = array<i64: 1, 32, 32>}, {transform_indices = @transform_8, window_bounds = array<i64: 1, 1, 32>}, {transform_indices = @transform_9, window_bounds = array<i64: 1, 1, 32>}, {transform_indices = @transform_10, window_bounds = array<i64: 1, 1, 32>}, {transform_indices = @transform_11, window_bounds = array<i64: 1, 32, 128>}, {transform_indices = @transform_12, window_bounds = array<i64: 1, 1, 128>}, {transform_indices = @transform_13, window_bounds = array<i64: 1, 128, 32>}, {transform_indices = @transform_14, window_bounds = array<i64: 1, 1, 32>}, {transform_indices = @transform_15, window_bounds = array<i64: 1, 8, 32>}]} {
    %c0_i32 = arith.constant 0 : i32
    %0 = arith.cmpi eq, %arg1, %c0_i32 : i32
    %1 = arith.extui %0 : i1 to i32
    %c0_i32_0 = arith.constant 0 : i32
    %2 = arith.cmpi ne, %1, %c0_i32_0 : i32
    scf.if %2 {
      %c0_78 = arith.constant 0 : index
      %c0_79 = arith.constant 0 : index
      %c0_80 = arith.constant 0 : index
      %199 = vector.load %arg2[%c0_78, %c0_79, %c0_80] : memref<1x8x32xf32, #tpu.memory_space<vmem>>, vector<1x8x32xf32>
      %200 = vector.shape_cast %199 : vector<1x8x32xf32> to vector<8x32xf32>
      %c0_81 = arith.constant 0 : index
      %c0_82 = arith.constant 0 : index
      %201 = vector.load %arg3[%c0_81, %c0_82] : memref<8x32xf32, #tpu.memory_space<vmem>>, vector<8x32xf32>
      %202 = arith.addf %200, %201 : vector<8x32xf32>
      %c0_83 = arith.constant 0 : index
      %c0_84 = arith.constant 0 : index
      %203 = vector.load %arg18[%c0_83, %c0_84] : memref<8x32xf32, #tpu.memory_space<vmem>>, vector<8x32xf32>
      tpu.vector_store %arg18[%c0_83, %c0_84], %202 {strides = array<i32>} : memref<8x32xf32, #tpu.memory_space<vmem>>, vector<8x32xf32>,
    } else {
    }
    %c1_i32 = arith.constant 1 : i32
    %3 = arith.cmpi sge, %arg1, %c1_i32 : i32
    %c1_i32_1 = arith.constant 1 : i32
    %4 = arith.cmpi sle, %arg1, %c1_i32_1 : i32
    %5 = arith.andi %3, %4 : i1
    %6 = arith.extui %5 : i1 to i32
    %c0_i32_2 = arith.constant 0 : i32
    %7 = arith.cmpi ne, %6, %c0_i32_2 : i32
    scf.if %7 {
      %c0_78 = arith.constant 0 : index
      %c0_79 = arith.constant 0 : index
      %c0_80 = arith.constant 0 : index
      %199 = vector.load %arg4[%c0_78, %c0_79, %c0_80] : memref<1x2x32xf32, #tpu.memory_space<vmem>>, vector<1x2x32xf32>
      %200 = vector.shape_cast %199 : vector<1x2x32xf32> to vector<2x32xf32>
      %c1 = arith.constant 1 : index
      %c0_81 = arith.constant 0 : index
      %201 = vector.load %arg18[%c1, %c0_81] : memref<8x32xf32, #tpu.memory_space<vmem>>, vector<2x32xf32>
      tpu.vector_store %arg18[%c1, %c0_81], %200 {strides = array<i32>} : memref<8x32xf32, #tpu.memory_space<vmem>>, vector<2x32xf32>,
    } else {
    }
    %c0 = arith.constant 0 : index
    %c0_3 = arith.constant 0 : index
    %8 = vector.load %arg18[%c0, %c0_3] : memref<8x32xf32, #tpu.memory_space<vmem>>, vector<8x32xf32>
    %c0_4 = arith.constant 0 : index
    %c0_5 = arith.constant 0 : index
    %c0_6 = arith.constant 0 : index
    %9 = vector.load %arg5[%c0_4, %c0_5, %c0_6] : memref<1x1x32xf32, #tpu.memory_space<vmem>>, vector<1x1x32xf32>
    %10 = vector.shape_cast %9 : vector<1x1x32xf32> to vector<1x32xf32>
    %c0_7 = arith.constant 0 : index
    %c0_8 = arith.constant 0 : index
    %c0_9 = arith.constant 0 : index
    %11 = vector.load %arg6[%c0_7, %c0_8, %c0_9] : memref<1x1x32xf32, #tpu.memory_space<vmem>>, vector<1x1x32xf32>
    %12 = vector.shape_cast %11 : vector<1x1x32xf32> to vector<1x32xf32>
    %cst = arith.constant dense<0.000000e+00> : vector<8xf32>
    %13 = vector.multi_reduction <add>, %8, %cst [1] : vector<8x32xf32> to vector<8xf32>
    %14 = vector.shape_cast %13 : vector<8xf32> to vector<8x1xf32>
    %cst_10 = arith.constant 3.200000e+01 : f32
    %15 = vector.broadcast %cst_10 : f32 to vector<8x1xf32>
    %16 = arith.divf %14, %15 : vector<8x1xf32>
    %17 = vector.broadcast %16 : vector<8x1xf32> to vector<8x32xf32>
    %18 = arith.subf %8, %17 : vector<8x32xf32>
    %19 = arith.mulf %18, %18 : vector<8x32xf32>
    %cst_11 = arith.constant dense<0.000000e+00> : vector<8xf32>
    %20 = vector.multi_reduction <add>, %19, %cst_11 [1] : vector<8x32xf32> to vector<8xf32>
    %21 = vector.shape_cast %20 : vector<8xf32> to vector<8x1xf32>
    %cst_12 = arith.constant 3.200000e+01 : f32
    %22 = vector.broadcast %cst_12 : f32 to vector<8x1xf32>
    %23 = arith.divf %21, %22 : vector<8x1xf32>
    %cst_13 = arith.constant 9.99999974E-6 : f32
    %24 = vector.broadcast %cst_13 : f32 to vector<8x1xf32>
    %25 = arith.addf %23, %24 : vector<8x1xf32>
    %26 = math.rsqrt %25 : vector<8x1xf32>
    %27 = vector.broadcast %26 : vector<8x1xf32> to vector<8x32xf32>
    %28 = arith.mulf %18, %27 : vector<8x32xf32>
    %29 = vector.broadcast %10 : vector<1x32xf32> to vector<8x32xf32>
    %30 = arith.mulf %28, %29 : vector<8x32xf32>
    %31 = vector.broadcast %12 : vector<1x32xf32> to vector<8x32xf32>
    %32 = arith.addf %30, %31 : vector<8x32xf32>
    %c0_14 = arith.constant 0 : index
    %c0_15 = arith.constant 0 : index
    %c0_16 = arith.constant 0 : index
    %33 = vector.load %arg7[%c0_14, %c0_15, %c0_16] : memref<1x32x96xbf16, #tpu.memory_space<vmem>>, vector<1x32x96xbf16>
    %34 = vector.shape_cast %33 : vector<1x32x96xbf16> to vector<32x96xbf16>
    %c0_17 = arith.constant 0 : index
    %c0_18 = arith.constant 0 : index
    %c0_19 = arith.constant 0 : index
    %35 = vector.load %arg8[%c0_17, %c0_18, %c0_19] : memref<1x1x96xf32, #tpu.memory_space<vmem>>, vector<1x1x96xf32>
    %36 = vector.shape_cast %35 : vector<1x1x96xf32> to vector<1x96xf32>
    %37 = arith.truncf %32 : vector<8x32xf32> to vector<8x32xbf16>
    %cst_20 = arith.constant dense<0.000000e+00> : vector<8x96xf32>
    %38 = tpu.matmul %37, %34, %cst_20 {dimension_numbers = #tpu.dot_dimension_numbers<[1], [0], [0], [1], [0, 0, 1, 1], [], []>} : vector<8x32xbf16>, vector<32x96xbf16>, vector<8x96xf32> -> vector<8x96xf32>
    %39 = vector.broadcast %36 : vector<1x96xf32> to vector<8x96xf32>
    %40 = arith.addf %38, %39 : vector<8x96xf32>
    %41 = vector.extract_strided_slice %40 {offsets = [0, 0], sizes = [8, 32], strides = [1, 1]} : vector<8x96xf32> to vector<8x32xf32>
    %cst_21 = arith.constant 0.353553385 : f32
    %42 = vector.broadcast %cst_21 : f32 to vector<8x32xf32>
    %43 = arith.mulf %41, %42 : vector<8x32xf32>
    %44 = vector.extract_strided_slice %40 {offsets = [0, 32], sizes = [8, 32], strides = [1, 1]} : vector<8x96xf32> to vector<8x32xf32>
    %45 = vector.extract_strided_slice %40 {offsets = [0, 64], sizes = [8, 32], strides = [1, 1]} : vector<8x96xf32> to vector<8x32xf32>
    %46 = tpu.iota {dimensions = array<i32: 0>} : vector<8x8xi32>
    %47 = tpu.iota {dimensions = array<i32: 1>} : vector<8x8xi32>
    %48 = arith.cmpi sgt, %47, %46 : vector<8x8xi32>
    %cst_22 = arith.constant -1.000000e+30 : f32
    %cst_23 = arith.constant 0.000000e+00 : f32
    %49 = vector.broadcast %cst_22 : f32 to vector<8x8xf32>
    %50 = vector.broadcast %cst_23 : f32 to vector<8x8xf32>
    %51 = arith.select %48, %49, %50 : vector<8x8xi1>, vector<8x8xf32>
    %52 = vector.extract_strided_slice %43 {offsets = [0, 0], sizes = [8, 8], strides = [1, 1]} : vector<8x32xf32> to vector<8x8xf32>
    %53 = arith.truncf %52 : vector<8x8xf32> to vector<8x8xbf16>
    %54 = vector.extract_strided_slice %44 {offsets = [0, 0], sizes = [8, 8], strides = [1, 1]} : vector<8x32xf32> to vector<8x8xf32>
    %55 = tpu.transpose %54, [1, 0] : vector<8x8xf32> -> vector<8x8xf32>
    %56 = arith.truncf %55 : vector<8x8xf32> to vector<8x8xbf16>
    %57 = vector.extract_strided_slice %45 {offsets = [0, 0], sizes = [8, 8], strides = [1, 1]} : vector<8x32xf32> to vector<8x8xf32>
    %58 = arith.truncf %57 : vector<8x8xf32> to vector<8x8xbf16>
    %cst_24 = arith.constant dense<0.000000e+00> : vector<8x8xf32>
    %59 = tpu.matmul %53, %56, %cst_24 {dimension_numbers = #tpu.dot_dimension_numbers<[1], [0], [0], [1], [0, 0, 1, 1], [], []>} : vector<8x8xbf16>, vector<8x8xbf16>, vector<8x8xf32> -> vector<8x8xf32>
    %60 = arith.addf %59, %51 : vector<8x8xf32>
    %cst_25 = arith.constant dense<0xFF800000> : vector<8xf32>
    %61 = vector.multi_reduction <maximumf>, %60, %cst_25 [1] : vector<8x8xf32> to vector<8xf32>
    %62 = vector.shape_cast %61 : vector<8xf32> to vector<8x1xf32>
    %63 = vector.broadcast %62 : vector<8x1xf32> to vector<8x8xf32>
    %64 = arith.subf %60, %63 : vector<8x8xf32>
    %65 = math.exp %64 : vector<8x8xf32>
    %cst_26 = arith.constant dense<0.000000e+00> : vector<8xf32>
    %66 = vector.multi_reduction <add>, %65, %cst_26 [1] : vector<8x8xf32> to vector<8xf32>
    %67 = vector.shape_cast %66 : vector<8xf32> to vector<8x1xf32>
    %68 = tpu.reciprocal %67 {approx = true} : vector<8x1xf32> -> vector<8x1xf32>
    %69 = vector.broadcast %68 : vector<8x1xf32> to vector<8x8xf32>
    %70 = arith.mulf %65, %69 : vector<8x8xf32>
    %71 = arith.truncf %70 : vector<8x8xf32> to vector<8x8xbf16>
    %cst_27 = arith.constant dense<0.000000e+00> : vector<8x8xf32>
    %72 = tpu.matmul %71, %58, %cst_27 {dimension_numbers = #tpu.dot_dimension_numbers<[1], [0], [0], [1], [0, 0, 1, 1], [], []>} : vector<8x8xbf16>, vector<8x8xbf16>, vector<8x8xf32> -> vector<8x8xf32>
    %73 = vector.extract_strided_slice %43 {offsets = [0, 8], sizes = [8, 8], strides = [1, 1]} : vector<8x32xf32> to vector<8x8xf32>
    %74 = arith.truncf %73 : vector<8x8xf32> to vector<8x8xbf16>
    %75 = vector.extract_strided_slice %44 {offsets = [0, 8], sizes = [8, 8], strides = [1, 1]} : vector<8x32xf32> to vector<8x8xf32>
    %76 = tpu.transpose %75, [1, 0] : vector<8x8xf32> -> vector<8x8xf32>
    %77 = arith.truncf %76 : vector<8x8xf32> to vector<8x8xbf16>
    %78 = vector.extract_strided_slice %45 {offsets = [0, 8], sizes = [8, 8], strides = [1, 1]} : vector<8x32xf32> to vector<8x8xf32>
    %79 = arith.truncf %78 : vector<8x8xf32> to vector<8x8xbf16>
    %cst_28 = arith.constant dense<0.000000e+00> : vector<8x8xf32>
    %80 = tpu.matmul %74, %77, %cst_28 {dimension_numbers = #tpu.dot_dimension_numbers<[1], [0], [0], [1], [0, 0, 1, 1], [], []>} : vector<8x8xbf16>, vector<8x8xbf16>, vector<8x8xf32> -> vector<8x8xf32>
    %81 = arith.addf %80, %51 : vector<8x8xf32>
    %cst_29 = arith.constant dense<0xFF800000> : vector<8xf32>
    %82 = vector.multi_reduction <maximumf>, %81, %cst_29 [1] : vector<8x8xf32> to vector<8xf32>
    %83 = vector.shape_cast %82 : vector<8xf32> to vector<8x1xf32>
    %84 = vector.broadcast %83 : vector<8x1xf32> to vector<8x8xf32>
    %85 = arith.subf %81, %84 : vector<8x8xf32>
    %86 = math.exp %85 : vector<8x8xf32>
    %cst_30 = arith.constant dense<0.000000e+00> : vector<8xf32>
    %87 = vector.multi_reduction <add>, %86, %cst_30 [1] : vector<8x8xf32> to vector<8xf32>
    %88 = vector.shape_cast %87 : vector<8xf32> to vector<8x1xf32>
    %89 = tpu.reciprocal %88 {approx = true} : vector<8x1xf32> -> vector<8x1xf32>
    %90 = vector.broadcast %89 : vector<8x1xf32> to vector<8x8xf32>
    %91 = arith.mulf %86, %90 : vector<8x8xf32>
    %92 = arith.truncf %91 : vector<8x8xf32> to vector<8x8xbf16>
    %cst_31 = arith.constant dense<0.000000e+00> : vector<8x8xf32>
    %93 = tpu.matmul %92, %79, %cst_31 {dimension_numbers = #tpu.dot_dimension_numbers<[1], [0], [0], [1], [0, 0, 1, 1], [], []>} : vector<8x8xbf16>, vector<8x8xbf16>, vector<8x8xf32> -> vector<8x8xf32>
    %94 = vector.extract_strided_slice %43 {offsets = [0, 16], sizes = [8, 8], strides = [1, 1]} : vector<8x32xf32> to vector<8x8xf32>
    %95 = arith.truncf %94 : vector<8x8xf32> to vector<8x8xbf16>
    %96 = vector.extract_strided_slice %44 {offsets = [0, 16], sizes = [8, 8], strides = [1, 1]} : vector<8x32xf32> to vector<8x8xf32>
    %97 = tpu.transpose %96, [1, 0] : vector<8x8xf32> -> vector<8x8xf32>
    %98 = arith.truncf %97 : vector<8x8xf32> to vector<8x8xbf16>
    %99 = vector.extract_strided_slice %45 {offsets = [0, 16], sizes = [8, 8], strides = [1, 1]} : vector<8x32xf32> to vector<8x8xf32>
    %100 = arith.truncf %99 : vector<8x8xf32> to vector<8x8xbf16>
    %cst_32 = arith.constant dense<0.000000e+00> : vector<8x8xf32>
    %101 = tpu.matmul %95, %98, %cst_32 {dimension_numbers = #tpu.dot_dimension_numbers<[1], [0], [0], [1], [0, 0, 1, 1], [], []>} : vector<8x8xbf16>, vector<8x8xbf16>, vector<8x8xf32> -> vector<8x8xf32>
    %102 = arith.addf %101, %51 : vector<8x8xf32>
    %cst_33 = arith.constant dense<0xFF800000> : vector<8xf32>
    %103 = vector.multi_reduction <maximumf>, %102, %cst_33 [1] : vector<8x8xf32> to vector<8xf32>
    %104 = vector.shape_cast %103 : vector<8xf32> to vector<8x1xf32>
    %105 = vector.broadcast %104 : vector<8x1xf32> to vector<8x8xf32>
    %106 = arith.subf %102, %105 : vector<8x8xf32>
    %107 = math.exp %106 : vector<8x8xf32>
    %cst_34 = arith.constant dense<0.000000e+00> : vector<8xf32>
    %108 = vector.multi_reduction <add>, %107, %cst_34 [1] : vector<8x8xf32> to vector<8xf32>
    %109 = vector.shape_cast %108 : vector<8xf32> to vector<8x1xf32>
    %110 = tpu.reciprocal %109 {approx = true} : vector<8x1xf32> -> vector<8x1xf32>
    %111 = vector.broadcast %110 : vector<8x1xf32> to vector<8x8xf32>
    %112 = arith.mulf %107, %111 : vector<8x8xf32>
    %113 = arith.truncf %112 : vector<8x8xf32> to vector<8x8xbf16>
    %cst_35 = arith.constant dense<0.000000e+00> : vector<8x8xf32>
    %114 = tpu.matmul %113, %100, %cst_35 {dimension_numbers = #tpu.dot_dimension_numbers<[1], [0], [0], [1], [0, 0, 1, 1], [], []>} : vector<8x8xbf16>, vector<8x8xbf16>, vector<8x8xf32> -> vector<8x8xf32>
    %115 = vector.extract_strided_slice %43 {offsets = [0, 24], sizes = [8, 8], strides = [1, 1]} : vector<8x32xf32> to vector<8x8xf32>
    %116 = arith.truncf %115 : vector<8x8xf32> to vector<8x8xbf16>
    %117 = vector.extract_strided_slice %44 {offsets = [0, 24], sizes = [8, 8], strides = [1, 1]} : vector<8x32xf32> to vector<8x8xf32>
    %118 = tpu.transpose %117, [1, 0] : vector<8x8xf32> -> vector<8x8xf32>
    %119 = arith.truncf %118 : vector<8x8xf32> to vector<8x8xbf16>
    %120 = vector.extract_strided_slice %45 {offsets = [0, 24], sizes = [8, 8], strides = [1, 1]} : vector<8x32xf32> to vector<8x8xf32>
    %121 = arith.truncf %120 : vector<8x8xf32> to vector<8x8xbf16>
    %cst_36 = arith.constant dense<0.000000e+00> : vector<8x8xf32>
    %122 = tpu.matmul %116, %119, %cst_36 {dimension_numbers = #tpu.dot_dimension_numbers<[1], [0], [0], [1], [0, 0, 1, 1], [], []>} : vector<8x8xbf16>, vector<8x8xbf16>, vector<8x8xf32> -> vector<8x8xf32>
    %123 = arith.addf %122, %51 : vector<8x8xf32>
    %cst_37 = arith.constant dense<0xFF800000> : vector<8xf32>
    %124 = vector.multi_reduction <maximumf>, %123, %cst_37 [1] : vector<8x8xf32> to vector<8xf32>
    %125 = vector.shape_cast %124 : vector<8xf32> to vector<8x1xf32>
    %126 = vector.broadcast %125 : vector<8x1xf32> to vector<8x8xf32>
    %127 = arith.subf %123, %126 : vector<8x8xf32>
    %128 = math.exp %127 : vector<8x8xf32>
    %cst_38 = arith.constant dense<0.000000e+00> : vector<8xf32>
    %129 = vector.multi_reduction <add>, %128, %cst_38 [1] : vector<8x8xf32> to vector<8xf32>
    %130 = vector.shape_cast %129 : vector<8xf32> to vector<8x1xf32>
    %131 = tpu.reciprocal %130 {approx = true} : vector<8x1xf32> -> vector<8x1xf32>
    %132 = vector.broadcast %131 : vector<8x1xf32> to vector<8x8xf32>
    %133 = arith.mulf %128, %132 : vector<8x8xf32>
    %134 = arith.truncf %133 : vector<8x8xf32> to vector<8x8xbf16>
    %cst_39 = arith.constant dense<0.000000e+00> : vector<8x8xf32>
    %135 = tpu.matmul %134, %121, %cst_39 {dimension_numbers = #tpu.dot_dimension_numbers<[1], [0], [0], [1], [0, 0, 1, 1], [], []>} : vector<8x8xbf16>, vector<8x8xbf16>, vector<8x8xf32> -> vector<8x8xf32>
    %136 = tpu.concatenate %72, %93, %114, %135 in 1 : vector<8x8xf32>, vector<8x8xf32>, vector<8x8xf32>, vector<8x8xf32> -> vector<8x32xf32>
    %c0_40 = arith.constant 0 : index
    %c0_41 = arith.constant 0 : index
    %c0_42 = arith.constant 0 : index
    %137 = vector.load %arg9[%c0_40, %c0_41, %c0_42] : memref<1x32x32xbf16, #tpu.memory_space<vmem>>, vector<1x32x32xbf16>
    %138 = vector.shape_cast %137 : vector<1x32x32xbf16> to vector<32x32xbf16>
    %c0_43 = arith.constant 0 : index
    %c0_44 = arith.constant 0 : index
    %c0_45 = arith.constant 0 : index
    %139 = vector.load %arg10[%c0_43, %c0_44, %c0_45] : memref<1x1x32xf32, #tpu.memory_space<vmem>>, vector<1x1x32xf32>
    %140 = vector.shape_cast %139 : vector<1x1x32xf32> to vector<1x32xf32>
    %141 = arith.truncf %136 : vector<8x32xf32> to vector<8x32xbf16>
    %cst_46 = arith.constant dense<0.000000e+00> : vector<8x32xf32>
    %142 = tpu.matmul %141, %138, %cst_46 {dimension_numbers = #tpu.dot_dimension_numbers<[1], [0], [0], [1], [0, 0, 1, 1], [], []>} : vector<8x32xbf16>, vector<32x32xbf16>, vector<8x32xf32> -> vector<8x32xf32>
    %143 = vector.broadcast %140 : vector<1x32xf32> to vector<8x32xf32>
    %144 = arith.addf %142, %143 : vector<8x32xf32>
    %145 = arith.addf %8, %144 : vector<8x32xf32>
    %c0_47 = arith.constant 0 : index
    %c0_48 = arith.constant 0 : index
    %c0_49 = arith.constant 0 : index
    %146 = vector.load %arg11[%c0_47, %c0_48, %c0_49] : memref<1x1x32xf32, #tpu.memory_space<vmem>>, vector<1x1x32xf32>
    %147 = vector.shape_cast %146 : vector<1x1x32xf32> to vector<1x32xf32>
    %c0_50 = arith.constant 0 : index
    %c0_51 = arith.constant 0 : index
    %c0_52 = arith.constant 0 : index
    %148 = vector.load %arg12[%c0_50, %c0_51, %c0_52] : memref<1x1x32xf32, #tpu.memory_space<vmem>>, vector<1x1x32xf32>
    %149 = vector.shape_cast %148 : vector<1x1x32xf32> to vector<1x32xf32>
    %cst_53 = arith.constant dense<0.000000e+00> : vector<8xf32>
    %150 = vector.multi_reduction <add>, %145, %cst_53 [1] : vector<8x32xf32> to vector<8xf32>
    %151 = vector.shape_cast %150 : vector<8xf32> to vector<8x1xf32>
    %cst_54 = arith.constant 3.200000e+01 : f32
    %152 = vector.broadcast %cst_54 : f32 to vector<8x1xf32>
    %153 = arith.divf %151, %152 : vector<8x1xf32>
    %154 = vector.broadcast %153 : vector<8x1xf32> to vector<8x32xf32>
    %155 = arith.subf %145, %154 : vector<8x32xf32>
    %156 = arith.mulf %155, %155 : vector<8x32xf32>
    %cst_55 = arith.constant dense<0.000000e+00> : vector<8xf32>
    %157 = vector.multi_reduction <add>, %156, %cst_55 [1] : vector<8x32xf32> to vector<8xf32>
    %158 = vector.shape_cast %157 : vector<8xf32> to vector<8x1xf32>
    %cst_56 = arith.constant 3.200000e+01 : f32
    %159 = vector.broadcast %cst_56 : f32 to vector<8x1xf32>
    %160 = arith.divf %158, %159 : vector<8x1xf32>
    %cst_57 = arith.constant 9.99999974E-6 : f32
    %161 = vector.broadcast %cst_57 : f32 to vector<8x1xf32>
    %162 = arith.addf %160, %161 : vector<8x1xf32>
    %163 = math.rsqrt %162 : vector<8x1xf32>
    %164 = vector.broadcast %163 : vector<8x1xf32> to vector<8x32xf32>
    %165 = arith.mulf %155, %164 : vector<8x32xf32>
    %166 = vector.broadcast %147 : vector<1x32xf32> to vector<8x32xf32>
    %167 = arith.mulf %165, %166 : vector<8x32xf32>
    %168 = vector.broadcast %149 : vector<1x32xf32> to vector<8x32xf32>
    %169 = arith.addf %167, %168 : vector<8x32xf32>
    %c0_58 = arith.constant 0 : index
    %c0_59 = arith.constant 0 : index
    %c0_60 = arith.constant 0 : index
    %170 = vector.load %arg13[%c0_58, %c0_59, %c0_60] : memref<1x32x128xbf16, #tpu.memory_space<vmem>>, vector<1x32x128xbf16>
    %171 = vector.shape_cast %170 : vector<1x32x128xbf16> to vector<32x128xbf16>
    %c0_61 = arith.constant 0 : index
    %c0_62 = arith.constant 0 : index
    %c0_63 = arith.constant 0 : index
    %172 = vector.load %arg14[%c0_61, %c0_62, %c0_63] : memref<1x1x128xf32, #tpu.memory_space<vmem>>, vector<1x1x128xf32>
    %173 = vector.shape_cast %172 : vector<1x1x128xf32> to vector<1x128xf32>
    %174 = arith.truncf %169 : vector<8x32xf32> to vector<8x32xbf16>
    %cst_64 = arith.constant dense<0.000000e+00> : vector<8x128xf32>
    %175 = tpu.matmul %174, %171, %cst_64 {dimension_numbers = #tpu.dot_dimension_numbers<[1], [0], [0], [1], [0, 0, 1, 1], [], []>} : vector<8x32xbf16>, vector<32x128xbf16>, vector<8x128xf32> -> vector<8x128xf32>
    %176 = vector.broadcast %173 : vector<1x128xf32> to vector<8x128xf32>
    %177 = arith.addf %175, %176 : vector<8x128xf32>
    %cst_65 = arith.constant 1.702000e+00 : f32
    %178 = vector.broadcast %cst_65 : f32 to vector<8x128xf32>
    %179 = arith.mulf %178, %177 : vector<8x128xf32>
    %180 = arith.negf %179 : vector<8x128xf32>
    %181 = math.exp %180 : vector<8x128xf32>
    %cst_66 = arith.constant 1.000000e+00 : f32
    %182 = vector.broadcast %cst_66 : f32 to vector<8x128xf32>
    %183 = arith.addf %182, %181 : vector<8x128xf32>
    %184 = arith.divf %182, %183 : vector<8x128xf32>
    %185 = arith.mulf %177, %184 : vector<8x128xf32>
    %c0_67 = arith.constant 0 : index
    %c0_68 = arith.constant 0 : index
    %c0_69 = arith.constant 0 : index
    %186 = vector.load %arg15[%c0_67, %c0_68, %c0_69] : memref<1x128x32xbf16, #tpu.memory_space<vmem>>, vector<1x128x32xbf16>
    %187 = vector.shape_cast %186 : vector<1x128x32xbf16> to vector<128x32xbf16>
    %c0_70 = arith.constant 0 : index
    %c0_71 = arith.constant 0 : index
    %c0_72 = arith.constant 0 : index
    %188 = vector.load %arg16[%c0_70, %c0_71, %c0_72] : memref<1x1x32xf32, #tpu.memory_space<vmem>>, vector<1x1x32xf32>
    %189 = vector.shape_cast %188 : vector<1x1x32xf32> to vector<1x32xf32>
    %190 = arith.truncf %185 : vector<8x128xf32> to vector<8x128xbf16>
    %cst_73 = arith.constant dense<0.000000e+00> : vector<8x32xf32>
    %191 = tpu.matmul %190, %187, %cst_73 {dimension_numbers = #tpu.dot_dimension_numbers<[1], [0], [0], [1], [0, 0, 1, 1], [], []>} : vector<8x128xbf16>, vector<128x32xbf16>, vector<8x32xf32> -> vector<8x32xf32>
    %192 = vector.broadcast %189 : vector<1x32xf32> to vector<8x32xf32>
    %193 = arith.addf %191, %192 : vector<8x32xf32>
    %194 = arith.addf %145, %193 : vector<8x32xf32>
    %c0_74 = arith.constant 0 : index
    %c0_75 = arith.constant 0 : index
    %195 = vector.load %arg18[%c0_74, %c0_75] : memref<8x32xf32, #tpu.memory_space<vmem>>, vector<8x32xf32>
    tpu.vector_store %arg18[%c0_74, %c0_75], %194 {strides = array<i32>} : memref<8x32xf32, #tpu.memory_space<vmem>>, vector<8x32xf32>,
    %c1_i32_76 = arith.constant 1 : i32
    %196 = arith.cmpi eq, %arg1, %c1_i32_76 : i32
    %197 = arith.extui %196 : i1 to i32
    %c0_i32_77 = arith.constant 0 : i32
    %198 = arith.cmpi ne, %197, %c0_i32_77 : i32
    scf.if %198 {
      %c0_78 = arith.constant 0 : index
      %c0_79 = arith.constant 0 : index
      %c0_80 = arith.constant 0 : index
      %199 = vector.load %arg17[%c0_78, %c0_79, %c0_80] : memref<1x8x32xf32, #tpu.memory_space<vmem>>, vector<1x8x32xf32>
      %200 = vector.shape_cast %199 : vector<1x8x32xf32> to vector<8x32xf32>
      %201 = vector.shape_cast %194 : vector<8x32xf32> to vector<1x8x32xf32>
      tpu.vector_store %arg17[%c0_78, %c0_79, %c0_80], %201 {strides = array<i32>} : memref<1x8x32xf32, #tpu.memory_space<vmem>>, vector<1x8x32xf32>,
    } else {
    }
    return
  }
  func.func @transform_0(%arg0: i32, %arg1: i32) -> (i32, i32, i32) {
    %c0_i32 = arith.constant 0 : i32
    %c0_i32_0 = arith.constant 0 : i32
    %c0_i32_1 = arith.constant 0 : i32
    return %arg0, %c0_i32, %c0_i32_0 : i32, i32, i32
  }
  func.func @transform_1(%arg0: i32, %arg1: i32) -> (i32, i32) {
    %c0_i32 = arith.constant 0 : i32
    %c0_i32_0 = arith.constant 0 : i32
    %c0_i32_1 = arith.constant 0 : i32
    return %c0_i32, %c0_i32_0 : i32, i32
  }
  func.func @transform_2(%arg0: i32, %arg1: i32) -> (i32, i32, i32) {
    %c1_i32 = arith.constant 1 : i32
    %0 = arith.subi %arg1, %c1_i32 : i32
    %c0_i32 = arith.constant 0 : i32
    %1 = arith.minsi %0, %c0_i32 : i32
    %c0_i32_0 = arith.constant 0 : i32
    %2 = arith.maxsi %1, %c0_i32_0 : i32
    %c0_i32_1 = arith.constant 0 : i32
    %c0_i32_2 = arith.constant 0 : i32
    %c0_i32_3 = arith.constant 0 : i32
    return %2, %c0_i32_1, %c0_i32_2 : i32, i32, i32
  }
  func.func @transform_3(%arg0: i32, %arg1: i32) -> (i32, i32, i32) {
    %c0_i32 = arith.constant 0 : i32
    %c0_i32_0 = arith.constant 0 : i32
    %c0_i32_1 = arith.constant 0 : i32
    return %arg1, %c0_i32, %c0_i32_0 : i32, i32, i32
  }
  func.func @transform_4(%arg0: i32, %arg1: i32) -> (i32, i32, i32) {
    %c0_i32 = arith.constant 0 : i32
    %c0_i32_0 = arith.constant 0 : i32
    %c0_i32_1 = arith.constant 0 : i32
    return %arg1, %c0_i32, %c0_i32_0 : i32, i32, i32
  }
  func.func @transform_5(%arg0: i32, %arg1: i32) -> (i32, i32, i32) {
    %c0_i32 = arith.constant 0 : i32
    %c0_i32_0 = arith.constant 0 : i32
    %c0_i32_1 = arith.constant 0 : i32
    return %arg1, %c0_i32, %c0_i32_0 : i32, i32, i32
  }
  func.func @transform_6(%arg0: i32, %arg1: i32) -> (i32, i32, i32) {
    %c0_i32 = arith.constant 0 : i32
    %c0_i32_0 = arith.constant 0 : i32
    %c0_i32_1 = arith.constant 0 : i32
    return %arg1, %c0_i32, %c0_i32_0 : i32, i32, i32
  }
  func.func @transform_7(%arg0: i32, %arg1: i32) -> (i32, i32, i32) {
    %c0_i32 = arith.constant 0 : i32
    %c0_i32_0 = arith.constant 0 : i32
    %c0_i32_1 = arith.constant 0 : i32
    return %arg1, %c0_i32, %c0_i32_0 : i32, i32, i32
  }
  func.func @transform_8(%arg0: i32, %arg1: i32) -> (i32, i32, i32) {
    %c0_i32 = arith.constant 0 : i32
    %c0_i32_0 = arith.constant 0 : i32
    %c0_i32_1 = arith.constant 0 : i32
    return %arg1, %c0_i32, %c0_i32_0 : i32, i32, i32
  }
  func.func @transform_9(%arg0: i32, %arg1: i32) -> (i32, i32, i32) {
    %c0_i32 = arith.constant 0 : i32
    %c0_i32_0 = arith.constant 0 : i32
    %c0_i32_1 = arith.constant 0 : i32
    return %arg1, %c0_i32, %c0_i32_0 : i32, i32, i32
  }
  func.func @transform_10(%arg0: i32, %arg1: i32) -> (i32, i32, i32) {
    %c0_i32 = arith.constant 0 : i32
    %c0_i32_0 = arith.constant 0 : i32
    %c0_i32_1 = arith.constant 0 : i32
    return %arg1, %c0_i32, %c0_i32_0 : i32, i32, i32
  }
  func.func @transform_11(%arg0: i32, %arg1: i32) -> (i32, i32, i32) {
    %c0_i32 = arith.constant 0 : i32
    %c0_i32_0 = arith.constant 0 : i32
    %c0_i32_1 = arith.constant 0 : i32
    return %arg1, %c0_i32, %c0_i32_0 : i32, i32, i32
  }
  func.func @transform_12(%arg0: i32, %arg1: i32) -> (i32, i32, i32) {
    %c0_i32 = arith.constant 0 : i32
    %c0_i32_0 = arith.constant 0 : i32
    %c0_i32_1 = arith.constant 0 : i32
    return %arg1, %c0_i32, %c0_i32_0 : i32, i32, i32
  }
  func.func @transform_13(%arg0: i32, %arg1: i32) -> (i32, i32, i32) {
    %c0_i32 = arith.constant 0 : i32
    %c0_i32_0 = arith.constant 0 : i32
    %c0_i32_1 = arith.constant 0 : i32
    return %arg1, %c0_i32, %c0_i32_0 : i32, i32, i32
  }
  func.func @transform_14(%arg0: i32, %arg1: i32) -> (i32, i32, i32) {
    %c0_i32 = arith.constant 0 : i32
    %c0_i32_0 = arith.constant 0 : i32
    %c0_i32_1 = arith.constant 0 : i32
    return %arg1, %c0_i32, %c0_i32_0 : i32, i32, i32
  }
  func.func @transform_15(%arg0: i32, %arg1: i32) -> (i32, i32, i32) {
    %c0_i32 = arith.constant 0 : i32
    %c0_i32_0 = arith.constant 0 : i32
    %c0_i32_1 = arith.constant 0 : i32
    return %arg0, %c0_i32, %c0_i32_0 : i32, i32, i32
  }
}

module attributes {stable_mosaic.version = 11 : i64} {
  func.func @_pooled_head_kernel(%arg0: i32, %arg1: memref<2x32xf32, #tpu.memory_space<vmem>>, %arg2: memref<1x32xf32, #tpu.memory_space<vmem>>, %arg3: memref<1x32xf32, #tpu.memory_space<vmem>>, %arg4: memref<32x16xbf16, #tpu.memory_space<vmem>>, %arg5: memref<2x16xf32, #tpu.memory_space<vmem>>) attributes {dimension_semantics = [#tpu.dimension_semantics<parallel>], iteration_bounds = array<i64: 1>, scalar_prefetch = 0 : i64, scratch_operands = 0 : i64, tpu.core_type = #tpu.core_type<tc>, window_params = [{transform_indices = @transform_0, window_bounds = array<i64: 2, 32>}, {pipeline_mode = #tpu.pipeline_mode<synchronous>, transform_indices = @transform_1, window_bounds = array<i64: 1, 32>}, {pipeline_mode = #tpu.pipeline_mode<synchronous>, transform_indices = @transform_2, window_bounds = array<i64: 1, 32>}, {pipeline_mode = #tpu.pipeline_mode<synchronous>, transform_indices = @transform_3, window_bounds = array<i64: 32, 16>}, {transform_indices = @transform_4, window_bounds = array<i64: 2, 16>}]} {
    %c0 = arith.constant 0 : index
    %c0_0 = arith.constant 0 : index
    %0 = vector.load %arg1[%c0, %c0_0] : memref<2x32xf32, #tpu.memory_space<vmem>>, vector<2x32xf32>
    %cst = arith.constant dense<0.000000e+00> : vector<2xf32>
    %1 = vector.multi_reduction <add>, %0, %cst [1] : vector<2x32xf32> to vector<2xf32>
    %2 = vector.shape_cast %1 : vector<2xf32> to vector<2x1xf32>
    %cst_1 = arith.constant 3.200000e+01 : f32
    %3 = vector.broadcast %cst_1 : f32 to vector<2x1xf32>
    %4 = arith.divf %2, %3 : vector<2x1xf32>
    %5 = vector.broadcast %4 : vector<2x1xf32> to vector<2x32xf32>
    %6 = arith.subf %0, %5 : vector<2x32xf32>
    %7 = arith.mulf %6, %6 : vector<2x32xf32>
    %cst_2 = arith.constant dense<0.000000e+00> : vector<2xf32>
    %8 = vector.multi_reduction <add>, %7, %cst_2 [1] : vector<2x32xf32> to vector<2xf32>
    %9 = vector.shape_cast %8 : vector<2xf32> to vector<2x1xf32>
    %cst_3 = arith.constant 3.200000e+01 : f32
    %10 = vector.broadcast %cst_3 : f32 to vector<2x1xf32>
    %11 = arith.divf %9, %10 : vector<2x1xf32>
    %cst_4 = arith.constant 9.99999974E-6 : f32
    %12 = vector.broadcast %cst_4 : f32 to vector<2x1xf32>
    %13 = arith.addf %11, %12 : vector<2x1xf32>
    %14 = math.rsqrt %13 : vector<2x1xf32>
    %15 = vector.broadcast %14 : vector<2x1xf32> to vector<2x32xf32>
    %16 = arith.mulf %6, %15 : vector<2x32xf32>
    %c0_5 = arith.constant 0 : index
    %c0_6 = arith.constant 0 : index
    %17 = vector.load %arg2[%c0_5, %c0_6] : memref<1x32xf32, #tpu.memory_space<vmem>>, vector<1x32xf32>
    %18 = vector.broadcast %17 : vector<1x32xf32> to vector<2x32xf32>
    %19 = arith.mulf %16, %18 : vector<2x32xf32>
    %c0_7 = arith.constant 0 : index
    %c0_8 = arith.constant 0 : index
    %20 = vector.load %arg3[%c0_7, %c0_8] : memref<1x32xf32, #tpu.memory_space<vmem>>, vector<1x32xf32>
    %21 = vector.broadcast %20 : vector<1x32xf32> to vector<2x32xf32>
    %22 = arith.addf %19, %21 : vector<2x32xf32>
    %23 = arith.truncf %22 : vector<2x32xf32> to vector<2x32xbf16>
    %c0_9 = arith.constant 0 : index
    %c0_10 = arith.constant 0 : index
    %24 = vector.load %arg4[%c0_9, %c0_10] : memref<32x16xbf16, #tpu.memory_space<vmem>>, vector<32x16xbf16>
    %cst_11 = arith.constant dense<0.000000e+00> : vector<2x16xf32>
    %25 = tpu.matmul %23, %24, %cst_11 {dimension_numbers = #tpu.dot_dimension_numbers<[1], [0], [0], [1], [0, 0, 1, 1], [], []>} : vector<2x32xbf16>, vector<32x16xbf16>, vector<2x16xf32> -> vector<2x16xf32>
    %c0_12 = arith.constant 0 : index
    %c0_13 = arith.constant 0 : index
    %26 = vector.load %arg5[%c0_12, %c0_13] : memref<2x16xf32, #tpu.memory_space<vmem>>, vector<2x16xf32>
    tpu.vector_store %arg5[%c0_12, %c0_13], %25 {strides = array<i32>} : memref<2x16xf32, #tpu.memory_space<vmem>>, vector<2x16xf32>,
    return
  }
  func.func @transform_0(%arg0: i32) -> (i32, i32) {
    %c0_i32 = arith.constant 0 : i32
    %c0_i32_0 = arith.constant 0 : i32
    return %arg0, %c0_i32 : i32, i32
  }
  func.func @transform_1(%arg0: i32) -> (i32, i32) {
    %c0_i32 = arith.constant 0 : i32
    %c0_i32_0 = arith.constant 0 : i32
    %c0_i32_1 = arith.constant 0 : i32
    return %c0_i32, %c0_i32_0 : i32, i32
  }
  func.func @transform_2(%arg0: i32) -> (i32, i32) {
    %c0_i32 = arith.constant 0 : i32
    %c0_i32_0 = arith.constant 0 : i32
    %c0_i32_1 = arith.constant 0 : i32
    return %c0_i32, %c0_i32_0 : i32, i32
  }
  func.func @transform_3(%arg0: i32) -> (i32, i32) {
    %c0_i32 = arith.constant 0 : i32
    %c0_i32_0 = arith.constant 0 : i32
    %c0_i32_1 = arith.constant 0 : i32
    return %c0_i32, %c0_i32_0 : i32, i32
  }
  func.func @transform_4(%arg0: i32) -> (i32, i32) {
    %c0_i32 = arith.constant 0 : i32
    %c0_i32_0 = arith.constant 0 : i32
    return %arg0, %c0_i32 : i32, i32
  }
}

</mosaic_0001>

<llo_original>
// kernel: text_encoder_forward.3
$region0: #{text_encoder_forward.3}
  #allocation0 [shape = 'u32[]', space=smem, size = 0x4, offset = 0x4, fixed_abs, tag = 'smem constant byte address 0x4 - core index']
  #allocation1 [shape = 'u32[144,128]{1,0:T(1,128)}', space=vmem, size = 0x12000, scoped, tag = 'internal scratch']
  %s0 = inlined_call_operand.vmem [shape: f32[2,32], index: 0, kind: input, shape index: {}]
  %s1 = inlined_call_operand.vmem [shape: f32[1,32], index: 1, kind: input, shape index: {}]
  %s2 = inlined_call_operand.vmem [shape: f32[1,32], index: 2, kind: input, shape index: {}]
  %s3 = inlined_call_operand.vmem [shape: bf16[32,16], index: 3, kind: input, shape index: {}]
  %s4 = inlined_call_operand.hbm [shape: f32[2,16], index: 4, kind: output, shape index: {}]
  %s5 = sld [smem:[#allocation0]]
  $region26: #{text_encoder_forward.3} parent=0
    _
  %s7 = ssub.s32 1, %s5
  %s8 = scalar_select 0, %s7, %s5
  $region1: #{text_encoder_forward.3} parent=0
    #allocation2 [shape = 'u8[1024]{0}', space=vmem, size = 0x400, scoped, tag = 'output window, operand 0, single buffered']
    #allocation3 [shape = 's32[1]{0}', space=sflag, size = 0x4, scoped, tag = 'scoped memory for text_encoder_forward.3']
    %9 = vsyncpa [#allocation3], 0
    // Predicated region
    $region2: #{text_encoder_forward.3} parent=1 // pred_check
      _
    $region3: #{text_encoder_forward.3} parent=1 // pred_check_branch
      %11 = sbr.rel (0) target = $region5
    $region4: #{text_encoder_forward.3} parent=1 // pred_region
      _
    $region5: #{text_encoder_forward.3} parent=1 // pred_fallthru
      _
    // Predicated region
    $region6: #{text_encoder_forward.3} parent=1 // pred_check
      _
    $region7: #{text_encoder_forward.3} parent=1 // pred_check_branch
      %13 = sbr.rel (0) target = $region9
    $region8: #{text_encoder_forward.3} parent=1 // pred_region
      _
    $region9: #{text_encoder_forward.3} parent=1 // pred_fallthru
      _
    // Predicated region
    $region10: #{text_encoder_forward.3} parent=1 // pred_check
      _
    $region11: #{text_encoder_forward.3} parent=1 // pred_check_branch
      %15 = sbr.rel (0) target = $region13
    $region12: #{text_encoder_forward.3} parent=1 // pred_region
      _
    $region13: #{text_encoder_forward.3} parent=1 // pred_fallthru
      _
    // Predicated region
    $region14: #{text_encoder_forward.3} parent=1 // pred_check
      _
    $region15: #{text_encoder_forward.3} parent=1 // pred_check_branch
      %17 = sbr.rel (0) target = $region17
    $region16: #{text_encoder_forward.3} parent=1 // pred_region
      _
    $region17: #{text_encoder_forward.3} parent=1 // pred_fallthru
      _
    %v19 = vld [vmem:[%s0] sm:$0x3]
    %vm20 = vcmask 254976
    %v21 = vsel %vm20, %v19, 0.0
    %22 = vadd.xlane.f32.xlu0 %v21
    %v23 = vpop.xlane.xlu0 %22
    %v24 = vrcp.pop 32.0
    %v25 = vmul.f32 %v23, %v24
    %v26 = vsub.f32 %v19, %v25
    %v27 = vmul.f32 %v26, %v26
    %v28 = vsel %vm20, %v27, 0.0
    %29 = vadd.xlane.f32.xlu0 %v28
    %v30 = vpop.xlane.xlu0 %29
    %v31 = vmul.f32 %v30, %v24
    %v32 = vadd.f32 %v31, 1e-05
    %v33 = vrsqrt.pop %v32
    %v34 = vmul.f32 %v26, %v33
    %v35 = vld [vmem:[%s1] sm:$0x1]
    %v37 = vlaneseq
    %v38 = vshrl.u32 %v37, 7
    %v39 = vsub.s32 0, %v38
    %v40 = vrot.slane %v35, %v39
    %v42 = vmul.f32 %v34, %v40
    %v43 = vld [vmem:[%s2] sm:$0x1]
    %v45 = vlaneseq
    %v46 = vshrl.u32 %v45, 7
    %v47 = vsub.s32 0, %v46
    %v48 = vrot.slane %v43, %v47
    %v50 = vadd.f32 %v42, %v48
    %v51 = vpack.c.bf16 %v50, %v50
    %v52 = vld [vmem:[%s3] sm:$0xf]
    %v53 = vld [vmem:[%s3 + $0x4] sm:$0xf]
    %v54 = vld [vmem:[%s3 + $0x8] sm:$0xf]
    %v55 = vld [vmem:[%s3 + $0xc] sm:$0xf]
    %v60 = vunpack.c.l.b16 %v52
    %v61 = vunpack.c.l.b16 %v53
    %v62 = vunpack.c.l.b16 %v54
    %v63 = vunpack.c.l.b16 %v55
    %v64 = vpack.c.b16 %v61, %v60
    %v65 = vpack.c.b16 %v63, %v62
    %vm68 = vcmask 261120
    %v70 = vsel %vm68, %v51, 0
    %72 = vmatprep.subr.bf16.mxu0 0
    %73 = vmatpush1.bf16.msra.mxu0 %v64
    %74 = vmatprep.subr.bf16.mxu0 0
    %75 = vmatpush1.bf16.msra.mxu0 %v65
    %76 = vmatprep.subr.bf16.mxu0 0
    %77 = vmatpush1.bf16.msra.mxu0 0
    %78 = vmatprep.subr.bf16.mxu0 0
    %79 = vmatpush1.bf16.msra.mxu0 0
    %80 = vmatprep.subr.bf16.mxu0 0
    %81 = vmatpush1.bf16.msra.mxu0 0
    %82 = vmatprep.subr.bf16.mxu0 0
    %83 = vmatpush1.bf16.msra.mxu0 0
    %84 = vmatprep.subr.bf16.mxu0 0
    %85 = vmatpush1.bf16.msra.mxu0 0
    %86 = vmatprep.subr.bf16.mxu0 0
    %87 = vmatpush1.bf16.msra.mxu0 0
    %88 = vmatprep.subr.bf16.mxu0 0
    %89 = vmatpush1.bf16.msra.mxu0 0
    %90 = vmatprep.subr.bf16.mxu0 0
    %91 = vmatpush1.bf16.msra.mxu0 0
    %92 = vmatprep.subr.bf16.mxu0 0
    %93 = vmatpush1.bf16.msra.mxu0 0
    %94 = vmatprep.subr.bf16.mxu0 0
    %95 = vmatpush1.bf16.msra.mxu0 0
    %96 = vmatprep.subr.bf16.mxu0 0
    %97 = vmatpush1.bf16.msra.mxu0 0
    %98 = vmatprep.subr.bf16.mxu0 0
    %99 = vmatpush1.bf16.msra.mxu0 0
    %100 = vmatprep.subr.bf16.mxu0 0
    %101 = vmatpush1.bf16.msra.mxu0 0
    %102 = vmatprep.subr.bf16.mxu0 0
    %103 = vmatpush1.bf16.msra.mxu0 0
    %104 = vmatprep.mubr.bf16.mxu0 0
    %105 = vmatmul.mubr.bf16.gmra.mrb[0].mxu0 %v70
    %v106 = vpop.f32.mrb[0].mxu0
    %v107 = vadd.f32 0.0, %v106
    %v108 = vpop.f32.mrb[0].mxu0
    %v109 = vpop.f32.mrb[0].mxu0
    %v110 = vpop.f32.mrb[0].mxu0
    %111 = vdwg.mxu0
    %vm112 = vcmask 123904
    %113 = vst.msk [vmem:[#allocation2] sm:$0x3] %vm112, %v107
    // Predicated region
    $region18: #{text_encoder_forward.3} parent=1 // pred_check
      _
    $region19: #{text_encoder_forward.3} parent=1 // pred_check_branch
      %115 = sbr.rel (0) target = $region21
    $region20: #{text_encoder_forward.3} parent=1 // pred_region
      %s117 = ssub.s32 32, 32
      %118 = vsyncadd [#allocation3], %s117
      %s120 = sshll.u32 [#allocation2], 4
      %s121 = int_to_ptr.vmem [resolvable:$true] %s120
      %123 = dma.vmem_to_hbm [thread:$0]  %s121, 32, %s4, [#allocation3]
    $region21: #{text_encoder_forward.3} parent=1 // pred_fallthru
      _
    // Predicated region
    $region22: #{text_encoder_forward.3} parent=1 // pred_check
      _
    $region23: #{text_encoder_forward.3} parent=1 // pred_check_branch
      %125 = sbr.rel (0) target = $region25
    $region24: #{text_encoder_forward.3} parent=1 // pred_region
      %126 = dma.done [#allocation3], 32
    $region25: #{text_encoder_forward.3} parent=1 // pred_fallthru
      _
    %127 = vsyncpa [#allocation3], 1

// kernel: text_encoder_forward.2
$region0: #{text_encoder_forward.2}
  #allocation0 [shape = 'u32[]', space=smem, size = 0x4, offset = 0x4, fixed_abs, tag = 'smem constant byte address 0x4 - core index']
  #allocation1 [shape = 'u32[144,128]{1,0:T(1,128)}', space=vmem, size = 0x12000, scoped, tag = 'internal scratch']
  #allocation2 [shape = 'f32[8,32]{1,0:T(8,128)}', space=vmem, size = 0x1000, scoped, tag = 'scratch operand']
  %s0 = inlined_call_operand.vmem [shape: f32[2,8,32], index: 0, kind: input, shape index: {}]
  %s1 = inlined_call_operand.vmem [shape: f32[8,32], index: 1, kind: input, shape index: {}]
  %s2 = inlined_call_operand.vmem [shape: f32[1,2,32], index: 2, kind: input, shape index: {}]
  %s3 = inlined_call_operand.vmem [shape: f32[2,1,32], index: 3, kind: input, shape index: {}]
  %s4 = inlined_call_operand.vmem [shape: f32[2,1,32], index: 4, kind: input, shape index: {}]
  %s5 = inlined_call_operand.vmem [shape: bf16[2,32,96], index: 5, kind: input, shape index: {}]
  %s6 = inlined_call_operand.vmem [shape: f32[2,1,96], index: 6, kind: input, shape index: {}]
  %s7 = inlined_call_operand.vmem [shape: bf16[2,32,32], index: 7, kind: input, shape index: {}]
  %s8 = inlined_call_operand.vmem [shape: f32[2,1,32], index: 8, kind: input, shape index: {}]
  %s9 = inlined_call_operand.vmem [shape: f32[2,1,32], index: 9, kind: input, shape index: {}]
  %s10 = inlined_call_operand.vmem [shape: f32[2,1,32], index: 10, kind: input, shape index: {}]
  %s11 = inlined_call_operand.vmem [shape: bf16[2,32,128], index: 11, kind: input, shape index: {}]
  %s12 = inlined_call_operand.vmem [shape: f32[2,1,128], index: 12, kind: input, shape index: {}]
  %s13 = inlined_call_operand.vmem [shape: bf16[2,128,32], index: 13, kind: input, shape index: {}]
  %s14 = inlined_call_operand.vmem [shape: f32[2,1,32], index: 14, kind: input, shape index: {}]
  %s15 = inlined_call_operand.vmem [shape: f32[2,8,32], index: 15, kind: output, shape index: {}]
  %s16 = sld [smem:[#allocation0]]
  $region105: #{text_encoder_forward.2} parent=0
    _
  %s18 = ssub.s32 1, %s16
  %s19 = scalar_select 0, %s18, %s16
  loop: start=0, step=1, limit=6
  $region2: #{text_encoder_forward.2} parent=0 // loop_pre_header
    _
  $region3: #{text_encoder_forward.2} parent=0 // loop_header
    %s21 = sphi 0, %s25
    %p22 = scmp.ge.s32.totalorder %s21, 6
    %s28 = sphi 0, %s40
    %s29 = sphi 0, %s36
    %s30 = sphi 0, %s28
    %s31 = sphi 0, %s29
    %s32 = sphi 0, %s30
    %s33 = sphi 0, %s31
    %s43 = sphi 0, %s45
    %s46 = sphi 0, %s43
    %s47 = sphi 0, %s46
    %s63 = sphi 0, %s47
    %s67 = sphi 0, %s67
    %s69 = sphi 0, %s67
    %s70 = sphi 0, %s69
    %s84 = sphi 0, %s70
    %s100 = sphi 0, %s102
    %s103 = sphi 0, %s100
    %s104 = sphi 0, %s103
    %s120 = sphi 0, %s104
    %s126 = sphi 0, %s128
    %s129 = sphi 0, %s126
    %s130 = sphi 0, %s129
    %s146 = sphi 0, %s130
    %s152 = sphi 0, %s154
    %s155 = sphi 0, %s152
    %s156 = sphi 0, %s155
    %s172 = sphi 0, %s156
    %s178 = sphi 0, %s180
    %s181 = sphi 0, %s178
    %s182 = sphi 0, %s181
    %s198 = sphi 0, %s182
    %s204 = sphi 0, %s206
    %s207 = sphi 0, %s204
    %s208 = sphi 0, %s207
    %s224 = sphi 0, %s208
    %s230 = sphi 0, %s232
    %s233 = sphi 0, %s230
    %s234 = sphi 0, %s233
    %s250 = sphi 0, %s234
    %s256 = sphi 0, %s258
    %s259 = sphi 0, %s256
    %s260 = sphi 0, %s259
    %s276 = sphi 0, %s260
    %s282 = sphi 0, %s284
    %s285 = sphi 0, %s282
    %s286 = sphi 0, %s285
    %s302 = sphi 0, %s286
    %s308 = sphi 0, %s310
    %s311 = sphi 0, %s308
    %s312 = sphi 0, %s311
    %s328 = sphi 0, %s312
    %s334 = sphi 0, %s336
    %s337 = sphi 0, %s334
    %s338 = sphi 0, %s337
    %s354 = sphi 0, %s338
    %s360 = sphi 0, %s362
    %s363 = sphi 0, %s360
    %s364 = sphi 0, %s363
    %s380 = sphi 0, %s364
    %s386 = sphi 0, %s388
    %s389 = sphi 0, %s386
    %s390 = sphi 0, %s389
    %s406 = sphi 0, %s390
    %s412 = sphi 0, %s414
    %s415 = sphi 0, %s412
    %s416 = sphi 0, %s415
    %s432 = sphi 0, %s416
    %s438 = sphi 0, %s440
    %s441 = sphi 0, %s438
    %s442 = sphi 0, %s441
    %s458 = sphi 0, %s442
  $region4: #{text_encoder_forward.2} parent=0 // loop_header_branch
    %24 = sbr.rel (%p22) target = $region8
  $region5: #{text_encoder_forward.2} parent=0 // loop_body
    %s26 = ssub.s32 %s21, 1
    %s27 = ssub.s32 %s21, 2
    %s34 = sadd.s32 1, %s29
    %p35 = scmp.ge.s32.totalorder %s34, 2
    %s36 = scalar_select %p35, 0, %s34
    %s37 = sadd.s32 1, %s28
    %s38 = scalar_select %p35, %s37, %s28
    %p39 = scmp.ge.s32.totalorder %s38, 2
    %s40 = scalar_select %p39, 0, %s38
    %s41 = ssub.s32 %s28, %s40
    %p42 = scmp.eq.s32.totalorder %s41, 0
    %s44 = sadd.s32 %s43, 1
    %s45 = scalar_select %p42, %s43, %s44
    %p48 = pneg %p42
    %p49 = scmp.eq.s32.totalorder %s21, 3
    %p50 = por %p48, %p49
    %p51 = scmp.ne.s32.totalorder %s43, %s46
    %p52 = scmp.eq.s32.totalorder %s21, 0
    %p53 = por %p51, %p52
    %p54 = scmp.ne.s32.totalorder %s43, %s46
    %p55 = scmp.eq.s32.totalorder %s26, 3
    %p56 = por %p54, %p55
    %p57 = scmp.ne.s32.totalorder %s46, %s47
    %p58 = scmp.eq.s32.totalorder %s26, 0
    %p59 = por %p57, %p58
    %p60 = scmp.ne.s32.totalorder %s46, %s47
    %p61 = scmp.eq.s32.totalorder %s27, 3
    %p62 = por %p60, %p61
    %p64 = scmp.ne.s32.totalorder %s47, %s63
    %p65 = scmp.eq.s32.totalorder %s27, 0
    %p66 = por %p64, %p65
    %s68 = sadd.s32 %s67, 1
    %p71 = scmp.eq.s32.totalorder %s21, 3
    %p72 = scmp.ne.s32.totalorder %s67, %s69
    %p73 = scmp.eq.s32.totalorder %s21, 0
    %p74 = por %p72, %p73
    %p75 = scmp.ne.s32.totalorder %s67, %s69
    %p76 = scmp.eq.s32.totalorder %s26, 3
    %p77 = por %p75, %p76
    %p78 = scmp.ne.s32.totalorder %s69, %s70
    %p79 = scmp.eq.s32.totalorder %s26, 0
    %p80 = por %p78, %p79
    %p81 = scmp.ne.s32.totalorder %s69, %s70
    %p82 = scmp.eq.s32.totalorder %s27, 3
    %p83 = por %p81, %p82
    %p85 = scmp.ne.s32.totalorder %s70, %s84
    %p86 = scmp.eq.s32.totalorder %s27, 0
    %p87 = por %p85, %p86
    %s88 = ssub.s32 %s29, 1
    %p89 = scmp.lt.s32.totalorder %s88, 0
    %s90 = scalar_select %p89, %s88, 0
    %p91 = scmp.gt.s32.totalorder %s90, 0
    %s92 = scalar_select %p91, %s90, 0
    %s93 = ssub.s32 %s36, 1
    %p94 = scmp.lt.s32.totalorder %s93, 0
    %s95 = scalar_select %p94, %s93, 0
    %p96 = scmp.gt.s32.totalorder %s95, 0
    %s97 = scalar_select %p96, %s95, 0
    %s98 = ssub.s32 %s92, %s97
    %p99 = scmp.eq.s32.totalorder %s98, 0
    %s101 = sadd.s32 %s100, 1
    %s102 = scalar_select %p99, %s100, %s101
    %p105 = pneg %p99
    %p106 = scmp.eq.s32.totalorder %s21, 3
    %p107 = por %p105, %p106
    %p108 = scmp.ne.s32.totalorder %s100, %s103
    %p109 = scmp.eq.s32.totalorder %s21, 0
    %p110 = por %p108, %p109
    %p111 = scmp.ne.s32.totalorder %s100, %s103
    %p112 = scmp.eq.s32.totalorder %s26, 3
    %p113 = por %p111, %p112
    %p114 = scmp.ne.s32.totalorder %s103, %s104
    %p115 = scmp.eq.s32.totalorder %s26, 0
    %p116 = por %p114, %p115
    %p117 = scmp.ne.s32.totalorder %s103, %s104
    %p118 = scmp.eq.s32.totalorder %s27, 3
    %p119 = por %p117, %p118
    %p121 = scmp.ne.s32.totalorder %s104, %s120
    %p122 = scmp.eq.s32.totalorder %s27, 0
    %p123 = por %p121, %p122
    %s124 = ssub.s32 %s29, %s36
    %p125 = scmp.eq.s32.totalorder %s124, 0
    %s127 = sadd.s32 %s126, 1
    %s128 = scalar_select %p125, %s126, %s127
    %p131 = pneg %p125
    %p132 = scmp.eq.s32.totalorder %s21, 3
    %p133 = por %p131, %p132
    %p134 = scmp.ne.s32.totalorder %s126, %s129
    %p135 = scmp.eq.s32.totalorder %s21, 0
    %p136 = por %p134, %p135
    %p137 = scmp.ne.s32.totalorder %s126, %s129
    %p138 = scmp.eq.s32.totalorder %s26, 3
    %p139 = por %p137, %p138
    %p140 = scmp.ne.s32.totalorder %s129, %s130
    %p141 = scmp.eq.s32.totalorder %s26, 0
    %p142 = por %p140, %p141
    %p143 = scmp.ne.s32.totalorder %s129, %s130
    %p144 = scmp.eq.s32.totalorder %s27, 3
    %p145 = por %p143, %p144
    %p147 = scmp.ne.s32.totalorder %s130, %s146
    %p148 = scmp.eq.s32.totalorder %s27, 0
    %p149 = por %p147, %p148
    %s150 = ssub.s32 %s29, %s36
    %p151 = scmp.eq.s32.totalorder %s150, 0
    %s153 = sadd.s32 %s152, 1
    %s154 = scalar_select %p151, %s152, %s153
    %p157 = pneg %p151
    %p158 = scmp.eq.s32.totalorder %s21, 3
    %p159 = por %p157, %p158
    %p160 = scmp.ne.s32.totalorder %s152, %s155
    %p161 = scmp.eq.s32.totalorder %s21, 0
    %p162 = por %p160, %p161
    %p163 = scmp.ne.s32.totalorder %s152, %s155
    %p164 = scmp.eq.s32.totalorder %s26, 3
    %p165 = por %p163, %p164
    %p166 = scmp.ne.s32.totalorder %s155, %s156
    %p167 = scmp.eq.s32.totalorder %s26, 0
    %p168 = por %p166, %p167
    %p169 = scmp.ne.s32.totalorder %s155, %s156
    %p170 = scmp.eq.s32.totalorder %s27, 3
    %p171 = por %p169, %p170
    %p173 = scmp.ne.s32.totalorder %s156, %s172
    %p174 = scmp.eq.s32.totalorder %s27, 0
    %p175 = por %p173, %p174
    %s176 = ssub.s32 %s29, %s36
    %p177 = scmp.eq.s32.totalorder %s176, 0
    %s179 = sadd.s32 %s178, 1
    %s180 = scalar_select %p177, %s178, %s179
    %p183 = pneg %p177
    %p184 = scmp.eq.s32.totalorder %s21, 3
    %p185 = por %p183, %p184
    %p186 = scmp.ne.s32.totalorder %s178, %s181
    %p187 = scmp.eq.s32.totalorder %s21, 0
    %p188 = por %p186, %p187
    %p189 = scmp.ne.s32.totalorder %s178, %s181
    %p190 = scmp.eq.s32.totalorder %s26, 3
    %p191 = por %p189, %p190
    %p192 = scmp.ne.s32.totalorder %s181, %s182
    %p193 = scmp.eq.s32.totalorder %s26, 0
    %p194 = por %p192, %p193
    %p195 = scmp.ne.s32.totalorder %s181, %s182
    %p196 = scmp.eq.s32.totalorder %s27, 3
    %p197 = por %p195, %p196
    %p199 = scmp.ne.s32.totalorder %s182, %s198
    %p200 = scmp.eq.s32.totalorder %s27, 0
    %p201 = por %p199, %p200
    %s202 = ssub.s32 %s29, %s36
    %p203 = scmp.eq.s32.totalorder %s202, 0
    %s205 = sadd.s32 %s204, 1
    %s206 = scalar_select %p203, %s204, %s205
    %p209 = pneg %p203
    %p210 = scmp.eq.s32.totalorder %s21, 3
    %p211 = por %p209, %p210
    %p212 = scmp.ne.s32.totalorder %s204, %s207
    %p213 = scmp.eq.s32.totalorder %s21, 0
    %p214 = por %p212, %p213
    %p215 = scmp.ne.s32.totalorder %s204, %s207
    %p216 = scmp.eq.s32.totalorder %s26, 3
    %p217 = por %p215, %p216
    %p218 = scmp.ne.s32.totalorder %s207, %s208
    %p219 = scmp.eq.s32.totalorder %s26, 0
    %p220 = por %p218, %p219
    %p221 = scmp.ne.s32.totalorder %s207, %s208
    %p222 = scmp.eq.s32.totalorder %s27, 3
    %p223 = por %p221, %p222
    %p225 = scmp.ne.s32.totalorder %s208, %s224
    %p226 = scmp.eq.s32.totalorder %s27, 0
    %p227 = por %p225, %p226
    %s228 = ssub.s32 %s29, %s36
    %p229 = scmp.eq.s32.totalorder %s228, 0
    %s231 = sadd.s32 %s230, 1
    %s232 = scalar_select %p229, %s230, %s231
    %p235 = pneg %p229
    %p236 = scmp.eq.s32.totalorder %s21, 3
    %p237 = por %p235, %p236
    %p238 = scmp.ne.s32.totalorder %s230, %s233
    %p239 = scmp.eq.s32.totalorder %s21, 0
    %p240 = por %p238, %p239
    %p241 = scmp.ne.s32.totalorder %s230, %s233
    %p242 = scmp.eq.s32.totalorder %s26, 3
    %p243 = por %p241, %p242
    %p244 = scmp.ne.s32.totalorder %s233, %s234
    %p245 = scmp.eq.s32.totalorder %s26, 0
    %p246 = por %p244, %p245
    %p247 = scmp.ne.s32.totalorder %s233, %s234
    %p248 = scmp.eq.s32.totalorder %s27, 3
    %p249 = por %p247, %p248
    %p251 = scmp.ne.s32.totalorder %s234, %s250
    %p252 = scmp.eq.s32.totalorder %s27, 0
    %p253 = por %p251, %p252
    %s254 = ssub.s32 %s29, %s36
    %p255 = scmp.eq.s32.totalorder %s254, 0
    %s257 = sadd.s32 %s256, 1
    %s258 = scalar_select %p255, %s256, %s257
    %p261 = pneg %p255
    %p262 = scmp.eq.s32.totalorder %s21, 3
    %p263 = por %p261, %p262
    %p264 = scmp.ne.s32.totalorder %s256, %s259
    %p265 = scmp.eq.s32.totalorder %s21, 0
    %p266 = por %p264, %p265
    %p267 = scmp.ne.s32.totalorder %s256, %s259
    %p268 = scmp.eq.s32.totalorder %s26, 3
    %p269 = por %p267, %p268
    %p270 = scmp.ne.s32.totalorder %s259, %s260
    %p271 = scmp.eq.s32.totalorder %s26, 0
    %p272 = por %p270, %p271
    %p273 = scmp.ne.s32.totalorder %s259, %s260
    %p274 = scmp.eq.s32.totalorder %s27, 3
    %p275 = por %p273, %p274
    %p277 = scmp.ne.s32.totalorder %s260, %s276
    %p278 = scmp.eq.s32.totalorder %s27, 0
    %p279 = por %p277, %p278
    %s280 = ssub.s32 %s29, %s36
    %p281 = scmp.eq.s32.totalorder %s280, 0
    %s283 = sadd.s32 %s282, 1
    %s284 = scalar_select %p281, %s282, %s283
    %p287 = pneg %p281
    %p288 = scmp.eq.s32.totalorder %s21, 3
    %p289 = por %p287, %p288
    %p290 = scmp.ne.s32.totalorder %s282, %s285
    %p291 = scmp.eq.s32.totalorder %s21, 0
    %p292 = por %p290, %p291
    %p293 = scmp.ne.s32.totalorder %s282, %s285
    %p294 = scmp.eq.s32.totalorder %s26, 3
    %p295 = por %p293, %p294
    %p296 = scmp.ne.s32.totalorder %s285, %s286
    %p297 = scmp.eq.s32.totalorder %s26, 0
    %p298 = por %p296, %p297
    %p299 = scmp.ne.s32.totalorder %s285, %s286
    %p300 = scmp.eq.s32.totalorder %s27, 3
    %p301 = por %p299, %p300
    %p303 = scmp.ne.s32.totalorder %s286, %s302
    %p304 = scmp.eq.s32.totalorder %s27, 0
    %p305 = por %p303, %p304
    %s306 = ssub.s32 %s29, %s36
    %p307 = scmp.eq.s32.totalorder %s306, 0
    %s309 = sadd.s32 %s308, 1
    %s310 = scalar_select %p307, %s308, %s309
    %p313 = pneg %p307
    %p314 = scmp.eq.s32.totalorder %s21, 3
    %p315 = por %p313, %p314
    %p316 = scmp.ne.s32.totalorder %s308, %s311
    %p317 = scmp.eq.s32.totalorder %s21, 0
    %p318 = por %p316, %p317
    %p319 = scmp.ne.s32.totalorder %s308, %s311
    %p320 = scmp.eq.s32.totalorder %s26, 3
    %p321 = por %p319, %p320
    %p322 = scmp.ne.s32.totalorder %s311, %s312
    %p323 = scmp.eq.s32.totalorder %s26, 0
    %p324 = por %p322, %p323
    %p325 = scmp.ne.s32.totalorder %s311, %s312
    %p326 = scmp.eq.s32.totalorder %s27, 3
    %p327 = por %p325, %p326
    %p329 = scmp.ne.s32.totalorder %s312, %s328
    %p330 = scmp.eq.s32.totalorder %s27, 0
    %p331 = por %p329, %p330
    %s332 = ssub.s32 %s29, %s36
    %p333 = scmp.eq.s32.totalorder %s332, 0
    %s335 = sadd.s32 %s334, 1
    %s336 = scalar_select %p333, %s334, %s335
    %p339 = pneg %p333
    %p340 = scmp.eq.s32.totalorder %s21, 3
    %p341 = por %p339, %p340
    %p342 = scmp.ne.s32.totalorder %s334, %s337
    %p343 = scmp.eq.s32.totalorder %s21, 0
    %p344 = por %p342, %p343
    %p345 = scmp.ne.s32.totalorder %s334, %s337
    %p346 = scmp.eq.s32.totalorder %s26, 3
    %p347 = por %p345, %p346
    %p348 = scmp.ne.s32.totalorder %s337, %s338
    %p349 = scmp.eq.s32.totalorder %s26, 0
    %p350 = por %p348, %p349
    %p351 = scmp.ne.s32.totalorder %s337, %s338
    %p352 = scmp.eq.s32.totalorder %s27, 3
    %p353 = por %p351, %p352
    %p355 = scmp.ne.s32.totalorder %s338, %s354
    %p356 = scmp.eq.s32.totalorder %s27, 0
    %p357 = por %p355, %p356
    %s358 = ssub.s32 %s29, %s36
    %p359 = scmp.eq.s32.totalorder %s358, 0
    %s361 = sadd.s32 %s360, 1
    %s362 = scalar_select %p359, %s360, %s361
    %p365 = pneg %p359
    %p366 = scmp.eq.s32.totalorder %s21, 3
    %p367 = por %p365, %p366
    %p368 = scmp.ne.s32.totalorder %s360, %s363
    %p369 = scmp.eq.s32.totalorder %s21, 0
    %p370 = por %p368, %p369
    %p371 = scmp.ne.s32.totalorder %s360, %s363
    %p372 = scmp.eq.s32.totalorder %s26, 3
    %p373 = por %p371, %p372
    %p374 = scmp.ne.s32.totalorder %s363, %s364
    %p375 = scmp.eq.s32.totalorder %s26, 0
    %p376 = por %p374, %p375
    %p377 = scmp.ne.s32.totalorder %s363, %s364
    %p378 = scmp.eq.s32.totalorder %s27, 3
    %p379 = por %p377, %p378
    %p381 = scmp.ne.s32.totalorder %s364, %s380
    %p382 = scmp.eq.s32.totalorder %s27, 0
    %p383 = por %p381, %p382
    %s384 = ssub.s32 %s29, %s36
    %p385 = scmp.eq.s32.totalorder %s384, 0
    %s387 = sadd.s32 %s386, 1
    %s388 = scalar_select %p385, %s386, %s387
    %p391 = pneg %p385
    %p392 = scmp.eq.s32.totalorder %s21, 3
    %p393 = por %p391, %p392
    %p394 = scmp.ne.s32.totalorder %s386, %s389
    %p395 = scmp.eq.s32.totalorder %s21, 0
    %p396 = por %p394, %p395
    %p397 = scmp.ne.s32.totalorder %s386, %s389
    %p398 = scmp.eq.s32.totalorder %s26, 3
    %p399 = por %p397, %p398
    %p400 = scmp.ne.s32.totalorder %s389, %s390
    %p401 = scmp.eq.s32.totalorder %s26, 0
    %p402 = por %p400, %p401
    %p403 = scmp.ne.s32.totalorder %s389, %s390
    %p404 = scmp.eq.s32.totalorder %s27, 3
    %p405 = por %p403, %p404
    %p407 = scmp.ne.s32.totalorder %s390, %s406
    %p408 = scmp.eq.s32.totalorder %s27, 0
    %p409 = por %p407, %p408
    %s410 = ssub.s32 %s29, %s36
    %p411 = scmp.eq.s32.totalorder %s410, 0
    %s413 = sadd.s32 %s412, 1
    %s414 = scalar_select %p411, %s412, %s413
    %p417 = pneg %p411
    %p418 = scmp.eq.s32.totalorder %s21, 3
    %p419 = por %p417, %p418
    %p420 = scmp.ne.s32.totalorder %s412, %s415
    %p421 = scmp.eq.s32.totalorder %s21, 0
    %p422 = por %p420, %p421
    %p423 = scmp.ne.s32.totalorder %s412, %s415
    %p424 = scmp.eq.s32.totalorder %s26, 3
    %p425 = por %p423, %p424
    %p426 = scmp.ne.s32.totalorder %s415, %s416
    %p427 = scmp.eq.s32.totalorder %s26, 0
    %p428 = por %p426, %p427
    %p429 = scmp.ne.s32.totalorder %s415, %s416
    %p430 = scmp.eq.s32.totalorder %s27, 3
    %p431 = por %p429, %p430
    %p433 = scmp.ne.s32.totalorder %s416, %s432
    %p434 = scmp.eq.s32.totalorder %s27, 0
    %p435 = por %p433, %p434
    %s436 = ssub.s32 %s28, %s40
    %p437 = scmp.eq.s32.totalorder %s436, 0
    %s439 = sadd.s32 %s438, 1
    %s440 = scalar_select %p437, %s438, %s439
    %p443 = pneg %p437
    %p444 = scmp.eq.s32.totalorder %s21, 3
    %p445 = por %p443, %p444
    %p446 = scmp.ne.s32.totalorder %s438, %s441
    %p447 = scmp.eq.s32.totalorder %s21, 0
    %p448 = por %p446, %p447
    %p449 = scmp.ne.s32.totalorder %s438, %s441
    %p450 = scmp.eq.s32.totalorder %s26, 3
    %p451 = por %p449, %p450
    %p452 = scmp.ne.s32.totalorder %s441, %s442
    %p453 = scmp.eq.s32.totalorder %s26, 0
    %p454 = por %p452, %p453
    %p455 = scmp.ne.s32.totalorder %s441, %s442
    %p456 = scmp.eq.s32.totalorder %s27, 3
    %p457 = por %p455, %p456
    %p459 = scmp.ne.s32.totalorder %s442, %s458
    %p460 = scmp.eq.s32.totalorder %s27, 0
    %p461 = por %p459, %p460
    %p462 = scmp.le.s32.totalorder 1, %s21
    %p463 = scmp.lt.s32.totalorder %s21, 5
    %p464 = pnand %p462, %p463
    %p465 = pneg %p464
    // Predicated region
    $region9: #{text_encoder_forward.2} parent=5 // pred_check
      _
    $region10: #{text_encoder_forward.2} parent=5 // pred_check_branch
      %467 = sbr.rel (%p464) target = $region12
    $region11: #{text_encoder_forward.2} parent=5 // pred_region
      %s468 = ssub.s32 %s21, 1
      // Predicated region
      $region13: #{text_encoder_forward.2} parent=11 // pred_check
        %p469 = pneg %p80
      $region14: #{text_encoder_forward.2} parent=11 // pred_check_branch
        %471 = sbr.rel (%p469) target = $region16
      $region15: #{text_encoder_forward.2} parent=11 // pred_region
        _
      $region16: #{text_encoder_forward.2} parent=11 // pred_fallthru
        _
    $region12: #{text_encoder_forward.2} parent=5 // pred_fallthru
      _
    %p472 = scmp.lt.s32.totalorder %s21, 4
    // Predicated region
    $region17: #{text_encoder_forward.2} parent=5 // pred_check
      %p473 = pneg %p472
    $region18: #{text_encoder_forward.2} parent=5 // pred_check_branch
      %475 = sbr.rel (%p473) target = $region20
    $region19: #{text_encoder_forward.2} parent=5 // pred_region
      // Predicated region
      $region21: #{text_encoder_forward.2} parent=19 // pred_check
        %p476 = pneg %p53
      $region22: #{text_encoder_forward.2} parent=19 // pred_check_branch
        %478 = sbr.rel (%p476) target = $region24
      $region23: #{text_encoder_forward.2} parent=19 // pred_region
        %p479 = scmp.lt.s32.totalorder %s28, 1
        %s480 = scalar_select %p479, %s28, 1
        %s481 = smul.addr %s480, 8
        %s482 = scalar_lea.vmem %s0, %s481
      $region24: #{text_encoder_forward.2} parent=19 // pred_fallthru
        _
      // Predicated region
      $region25: #{text_encoder_forward.2} parent=19 // pred_check
        %p483 = pneg %p110
      $region26: #{text_encoder_forward.2} parent=19 // pred_check_branch
        %485 = sbr.rel (%p483) target = $region28
      $region27: #{text_encoder_forward.2} parent=19 // pred_region
        %s486 = ssub.s32 %s29, 1
        %p487 = scmp.lt.s32.totalorder %s486, 0
        %s488 = scalar_select %p487, %s486, 0
        %p489 = scmp.gt.s32.totalorder %s488, 0
        %s490 = scalar_select %p489, %s488, 0
        %p491 = scmp.lt.s32.totalorder %s490, 0
        %s492 = scalar_select %p491, %s490, 0
        %s493 = smul.addr %s492, 2
        %s494 = scalar_lea.vmem %s2, %s493
        %s495 = ssub.s32 %s29, 1
        %p496 = scmp.lt.s32.totalorder %s495, 0
        %s497 = scalar_select %p496, %s495, 0
        %p498 = scmp.gt.s32.totalorder %s497, 0
        %s499 = scalar_select %p498, %s497, 0
      $region28: #{text_encoder_forward.2} parent=19 // pred_fallthru
        _
      // Predicated region
      $region29: #{text_encoder_forward.2} parent=19 // pred_check
        %p500 = pneg %p136
      $region30: #{text_encoder_forward.2} parent=19 // pred_check_branch
        %502 = sbr.rel (%p500) target = $region32
      $region31: #{text_encoder_forward.2} parent=19 // pred_region
        %p503 = scmp.lt.s32.totalorder %s29, 1
        %s504 = scalar_select %p503, %s29, 1
        %s505 = scalar_lea.vmem %s3, %s504
      $region32: #{text_encoder_forward.2} parent=19 // pred_fallthru
        _
      // Predicated region
      $region33: #{text_encoder_forward.2} parent=19 // pred_check
        %p506 = pneg %p162
      $region34: #{text_encoder_forward.2} parent=19 // pred_check_branch
        %508 = sbr.rel (%p506) target = $region36
      $region35: #{text_encoder_forward.2} parent=19 // pred_region
        %p509 = scmp.lt.s32.totalorder %s29, 1
        %s510 = scalar_select %p509, %s29, 1
        %s511 = scalar_lea.vmem %s4, %s510
      $region36: #{text_encoder_forward.2} parent=19 // pred_fallthru
        _
      // Predicated region
      $region37: #{text_encoder_forward.2} parent=19 // pred_check
        %p512 = pneg %p188
      $region38: #{text_encoder_forward.2} parent=19 // pred_check_branch
        %514 = sbr.rel (%p512) target = $region40
      $region39: #{text_encoder_forward.2} parent=19 // pred_region
        %p515 = scmp.lt.s32.totalorder %s29, 1
        %s516 = scalar_select %p515, %s29, 1
        %s517 = smul.addr %s516, 4
        %s518 = smul.addr %s517, 4
        %s519 = scalar_lea.vmem %s5, %s518
      $region40: #{text_encoder_forward.2} parent=19 // pred_fallthru
        _
      // Predicated region
      $region41: #{text_encoder_forward.2} parent=19 // pred_check
        %p520 = pneg %p214
      $region42: #{text_encoder_forward.2} parent=19 // pred_check_branch
        %522 = sbr.rel (%p520) target = $region44
      $region43: #{text_encoder_forward.2} parent=19 // pred_region
        %p523 = scmp.lt.s32.totalorder %s29, 1
        %s524 = scalar_select %p523, %s29, 1
        %s525 = scalar_lea.vmem %s6, %s524
      $region44: #{text_encoder_forward.2} parent=19 // pred_fallthru
        _
      // Predicated region
      $region45: #{text_encoder_forward.2} parent=19 // pred_check
        %p526 = pneg %p240
      $region46: #{text_encoder_forward.2} parent=19 // pred_check_branch
        %528 = sbr.rel (%p526) target = $region48
      $region47: #{text_encoder_forward.2} parent=19 // pred_region
        %p529 = scmp.lt.s32.totalorder %s29, 1
        %s530 = scalar_select %p529, %s29, 1
        %s531 = smul.addr %s530, 4
        %s532 = smul.addr %s531, 4
        %s533 = scalar_lea.vmem %s7, %s532
      $region48: #{text_encoder_forward.2} parent=19 // pred_fallthru
        _
      // Predicated region
      $region49: #{text_encoder_forward.2} parent=19 // pred_check
        %p534 = pneg %p266
      $region50: #{text_encoder_forward.2} parent=19 // pred_check_branch
        %536 = sbr.rel (%p534) target = $region52
      $region51: #{text_encoder_forward.2} parent=19 // pred_region
        %p537 = scmp.lt.s32.totalorder %s29, 1
        %s538 = scalar_select %p537, %s29, 1
        %s539 = scalar_lea.vmem %s8, %s538
      $region52: #{text_encoder_forward.2} parent=19 // pred_fallthru
        _
      // Predicated region
      $region53: #{text_encoder_forward.2} parent=19 // pred_check
        %p540 = pneg %p292
      $region54: #{text_encoder_forward.2} parent=19 // pred_check_branch
        %542 = sbr.rel (%p540) target = $region56
      $region55: #{text_encoder_forward.2} parent=19 // pred_region
        %p543 = scmp.lt.s32.totalorder %s29, 1
        %s544 = scalar_select %p543, %s29, 1
        %s545 = scalar_lea.vmem %s9, %s544
      $region56: #{text_encoder_forward.2} parent=19 // pred_fallthru
        _
      // Predicated region
      $region57: #{text_encoder_forward.2} parent=19 // pred_check
        %p546 = pneg %p318
      $region58: #{text_encoder_forward.2} parent=19 // pred_check_branch
        %548 = sbr.rel (%p546) target = $region60
      $region59: #{text_encoder_forward.2} parent=19 // pred_region
        %p549 = scmp.lt.s32.totalorder %s29, 1
        %s550 = scalar_select %p549, %s29, 1
        %s551 = scalar_lea.vmem %s10, %s550
      $region60: #{text_encoder_forward.2} parent=19 // pred_fallthru
        _
      // Predicated region
      $region61: #{text_encoder_forward.2} parent=19 // pred_check
        %p552 = pneg %p344
      $region62: #{text_encoder_forward.2} parent=19 // pred_check_branch
        %554 = sbr.rel (%p552) target = $region64
      $region63: #{text_encoder_forward.2} parent=19 // pred_region
        %p555 = scmp.lt.s32.totalorder %s29, 1
        %s556 = scalar_select %p555, %s29, 1
        %s557 = smul.addr %s556, 4
        %s558 = smul.addr %s557, 4
        %s559 = scalar_lea.vmem %s11, %s558
      $region64: #{text_encoder_forward.2} parent=19 // pred_fallthru
        _
      // Predicated region
      $region65: #{text_encoder_forward.2} parent=19 // pred_check
        %p560 = pneg %p370
      $region66: #{text_encoder_forward.2} parent=19 // pred_check_branch
        %562 = sbr.rel (%p560) target = $region68
      $region67: #{text_encoder_forward.2} parent=19 // pred_region
        %p563 = scmp.lt.s32.totalorder %s29, 1
        %s564 = scalar_select %p563, %s29, 1
        %s565 = scalar_lea.vmem %s12, %s564
      $region68: #{text_encoder_forward.2} parent=19 // pred_fallthru
        _
      // Predicated region
      $region69: #{text_encoder_forward.2} parent=19 // pred_check
        %p566 = pneg %p396
      $region70: #{text_encoder_forward.2} parent=19 // pred_check_branch
        %568 = sbr.rel (%p566) target = $region72
      $region71: #{text_encoder_forward.2} parent=19 // pred_region
        %p569 = scmp.lt.s32.totalorder %s29, 1
        %s570 = scalar_select %p569, %s29, 1
        %s571 = smul.addr %s570, 16
        %s572 = smul.addr %s571, 4
        %s573 = scalar_lea.vmem %s13, %s572
      $region72: #{text_encoder_forward.2} parent=19 // pred_fallthru
        _
      // Predicated region
      $region73: #{text_encoder_forward.2} parent=19 // pred_check
        %p574 = pneg %p422
      $region74: #{text_encoder_forward.2} parent=19 // pred_check_branch
        %576 = sbr.rel (%p574) target = $region76
      $region75: #{text_encoder_forward.2} parent=19 // pred_region
        %p577 = scmp.lt.s32.totalorder %s29, 1
        %s578 = scalar_select %p577, %s29, 1
        %s579 = scalar_lea.vmem %s14, %s578
      $region76: #{text_encoder_forward.2} parent=19 // pred_fallthru
        _
    $region20: #{text_encoder_forward.2} parent=5 // pred_fallthru
      _
    %p580 = scmp.le.s32.totalorder 1, %s21
    %p581 = scmp.lt.s32.totalorder %s21, 5
    %p582 = pnand %p580, %p581
    %p583 = pneg %p582
    // Predicated region
    $region77: #{text_encoder_forward.2} parent=5 // pred_check
      _
    $region78: #{text_encoder_forward.2} parent=5 // pred_check_branch
      %585 = sbr.rel (%p582) target = $region80
    $region79: #{text_encoder_forward.2} parent=5 // pred_region
      %s586 = ssub.s32 %s21, 1
      %p587 = scmp.lt.s32.totalorder %s30, 1
      %s588 = scalar_select %p587, %s30, 1
      %s589 = smul.addr %s588, 8
      %s590 = scalar_lea.vmem %s0, %s589
      %p591 = pneg %p59
      %p592 = pneg %p56
      %p593 = pneg %p80
      %p594 = pneg %p77
      %s595 = ssub.s32 %s31, 1
      %p596 = scmp.lt.s32.totalorder %s595, 0
      %s597 = scalar_select %p596, %s595, 0
      %p598 = scmp.gt.s32.totalorder %s597, 0
      %s599 = scalar_select %p598, %s597, 0
      %p600 = scmp.lt.s32.totalorder %s599, 0
      %s601 = scalar_select %p600, %s599, 0
      %s602 = smul.addr %s601, 2
      %s603 = scalar_lea.vmem %s2, %s602
      %p604 = pneg %p116
      %p605 = pneg %p113
      %p606 = scmp.lt.s32.totalorder %s31, 1
      %s607 = scalar_select %p606, %s31, 1
      %s608 = scalar_lea.vmem %s3, %s607
      %p609 = pneg %p142
      %p610 = pneg %p139
      %p611 = scmp.lt.s32.totalorder %s31, 1
      %s612 = scalar_select %p611, %s31, 1
      %s613 = scalar_lea.vmem %s4, %s612
      %p614 = pneg %p168
      %p615 = pneg %p165
      %p616 = scmp.lt.s32.totalorder %s31, 1
      %s617 = scalar_select %p616, %s31, 1
      %s618 = smul.addr %s617, 4
      %s619 = smul.addr %s618, 4
      %s620 = scalar_lea.vmem %s5, %s619
      %p621 = pneg %p194
      %p622 = pneg %p191
      %p623 = scmp.lt.s32.totalorder %s31, 1
      %s624 = scalar_select %p623, %s31, 1
      %s625 = scalar_lea.vmem %s6, %s624
      %p626 = pneg %p220
      %p627 = pneg %p217
      %p628 = scmp.lt.s32.totalorder %s31, 1
      %s629 = scalar_select %p628, %s31, 1
      %s630 = smul.addr %s629, 4
      %s631 = smul.addr %s630, 4
      %s632 = scalar_lea.vmem %s7, %s631
      %p633 = pneg %p246
      %p634 = pneg %p243
      %p635 = scmp.lt.s32.totalorder %s31, 1
      %s636 = scalar_select %p635, %s31, 1
      %s637 = scalar_lea.vmem %s8, %s636
      %p638 = pneg %p272
      %p639 = pneg %p269
      %p640 = scmp.lt.s32.totalorder %s31, 1
      %s641 = scalar_select %p640, %s31, 1
      %s642 = scalar_lea.vmem %s9, %s641
      %p643 = pneg %p298
      %p644 = pneg %p295
      %p645 = scmp.lt.s32.totalorder %s31, 1
      %s646 = scalar_select %p645, %s31, 1
      %s647 = scalar_lea.vmem %s10, %s646
      %p648 = pneg %p324
      %p649 = pneg %p321
      %p650 = scmp.lt.s32.totalorder %s31, 1
      %s651 = scalar_select %p650, %s31, 1
      %s652 = smul.addr %s651, 4
      %s653 = smul.addr %s652, 4
      %s654 = scalar_lea.vmem %s11, %s653
      %p655 = pneg %p350
      %p656 = pneg %p347
      %p657 = scmp.lt.s32.totalorder %s31, 1
      %s658 = scalar_select %p657, %s31, 1
      %s659 = scalar_lea.vmem %s12, %s658
      %p660 = pneg %p376
      %p661 = pneg %p373
      %p662 = scmp.lt.s32.totalorder %s31, 1
      %s663 = scalar_select %p662, %s31, 1
      %s664 = smul.addr %s663, 16
      %s665 = smul.addr %s664, 4
      %s666 = scalar_lea.vmem %s13, %s665
      %p667 = pneg %p402
      %p668 = pneg %p399
      %p669 = scmp.lt.s32.totalorder %s31, 1
      %s670 = scalar_select %p669, %s31, 1
      %s671 = scalar_lea.vmem %s14, %s670
      %p672 = pneg %p428
      %p673 = pneg %p425
      %p674 = pneg %p454
      %p675 = pneg %p451
      %p676 = scmp.lt.s32.totalorder %s30, 1
      %s677 = scalar_select %p676, %s30, 1
      %s678 = smul.addr %s677, 8
      %s679 = scalar_lea.vmem %s15, %s678
      %p680 = scmp.lt.s32.totalorder %s30, 1
      %s681 = scalar_select %p680, %s30, 1
      %s682 = smul.addr %s681, 8
      %s683 = scalar_lea.vmem %s0, %s682
      %s684 = ssub.s32 %s31, 1
      %p685 = scmp.lt.s32.totalorder %s684, 0
      %s686 = scalar_select %p685, %s684, 0
      %p687 = scmp.gt.s32.totalorder %s686, 0
      %s688 = scalar_select %p687, %s686, 0
      %p689 = scmp.lt.s32.totalorder %s688, 0
      %s690 = scalar_select %p689, %s688, 0
      %s691 = smul.addr %s690, 2
      %s692 = scalar_lea.vmem %s2, %s691
      %s693 = ssub.s32 %s31, 1
      %p694 = scmp.lt.s32.totalorder %s693, 0
      %s695 = scalar_select %p694, %s693, 0
      %p696 = scmp.gt.s32.totalorder %s695, 0
      %s697 = scalar_select %p696, %s695, 0
      %p698 = scmp.lt.s32.totalorder %s31, 1
      %s699 = scalar_select %p698, %s31, 1
      %s700 = scalar_lea.vmem %s3, %s699
      %p701 = scmp.lt.s32.totalorder %s31, 1
      %s702 = scalar_select %p701, %s31, 1
      %s703 = scalar_lea.vmem %s4, %s702
      %p704 = scmp.lt.s32.totalorder %s31, 1
      %s705 = scalar_select %p704, %s31, 1
      %s706 = smul.addr %s705, 4
      %s707 = smul.addr %s706, 4
      %s708 = scalar_lea.vmem %s5, %s707
      %p709 = scmp.lt.s32.totalorder %s31, 1
      %s710 = scalar_select %p709, %s31, 1
      %s711 = scalar_lea.vmem %s6, %s710
      %p712 = scmp.lt.s32.totalorder %s31, 1
      %s713 = scalar_select %p712, %s31, 1
      %s714 = smul.addr %s713, 4
      %s715 = smul.addr %s714, 4
      %s716 = scalar_lea.vmem %s7, %s715
      %p717 = scmp.lt.s32.totalorder %s31, 1
      %s718 = scalar_select %p717, %s31, 1
      %s719 = scalar_lea.vmem %s8, %s718
      %p720 = scmp.lt.s32.totalorder %s31, 1
      %s721 = scalar_select %p720, %s31, 1
      %s722 = scalar_lea.vmem %s9, %s721
      %p723 = scmp.lt.s32.totalorder %s31, 1
      %s724 = scalar_select %p723, %s31, 1
      %s725 = scalar_lea.vmem %s10, %s724
      %p726 = scmp.lt.s32.totalorder %s31, 1
      %s727 = scalar_select %p726, %s31, 1
      %s728 = smul.addr %s727, 4
      %s729 = smul.addr %s728, 4
      %s730 = scalar_lea.vmem %s11, %s729
      %p731 = scmp.lt.s32.totalorder %s31, 1
      %s732 = scalar_select %p731, %s31, 1
      %s733 = scalar_lea.vmem %s12, %s732
      %p734 = scmp.lt.s32.totalorder %s31, 1
      %s735 = scalar_select %p734, %s31, 1
      %s736 = smul.addr %s735, 16
      %s737 = smul.addr %s736, 4
      %s738 = scalar_lea.vmem %s13, %s737
      %p739 = scmp.lt.s32.totalorder %s31, 1
      %s740 = scalar_select %p739, %s31, 1
      %s741 = scalar_lea.vmem %s14, %s740
      %p742 = scmp.lt.s32.totalorder %s30, 1
      %s743 = scalar_select %p742, %s30, 1
      %s744 = smul.addr %s743, 8
      %s745 = scalar_lea.vmem %s15, %s744
      %p747 = scmp.eq.s32.totalorder %s31, 0
      // Predicated region
      $region81: #{text_encoder_forward.2} parent=79 // pred_check
        %p748 = pneg %p747
      $region82: #{text_encoder_forward.2} parent=79 // pred_check_branch
        %750 = sbr.rel (%p748) target = $region84
      $region83: #{text_encoder_forward.2} parent=79 // pred_region
        %v751 = vld [vmem:[%s683] sm:$0xff]
        %v752 = vld [vmem:[%s1] sm:$0xff]
        %v753 = vadd.f32 %v751, %v752
        %vm754 = vcmask 261120
        %755 = vst.msk [vmem:[#allocation2] sm:$0xff] %vm754, %v753
      $region84: #{text_encoder_forward.2} parent=79 // pred_fallthru
        _
      %p756 = scmp.ge.s32.totalorder %s31, 1
      %p757 = scmp.le.s32.totalorder %s31, 1
      %p758 = pnand %p756, %p757
      %p759 = pneg %p758
      // Predicated region
      $region85: #{text_encoder_forward.2} parent=79 // pred_check
        _
      $region86: #{text_encoder_forward.2} parent=79 // pred_check_branch
        %761 = sbr.rel (%p758) target = $region88
      $region87: #{text_encoder_forward.2} parent=79 // pred_region
        %v762 = vld [vmem:[%s692] sm:$0x3]
        %vm763 = vcmask 254976
        %764 = vst.msk [vmem:[#allocation2 + $0x1] sm:$0x3] %vm763, %v762
      $region88: #{text_encoder_forward.2} parent=79 // pred_fallthru
        _
      %v765 = vld [vmem:[#allocation2] sm:$0xff]
      %v766 = vld [vmem:[%s700] sm:$0x1]
      %v767 = vld [vmem:[%s703] sm:$0x1]
      %vm768 = vcmask 261120
      %v769 = vsel %vm768, %v765, 0.0
      %770 = vadd.xlane.f32.xlu0 %v769
      %v771 = vpop.xlane.xlu0 %770
      %v772 = vrcp.pop 32.0
      %v773 = vmul.f32 %v771, %v772
      %v774 = vsub.f32 %v765, %v773
      %v775 = vmul.f32 %v774, %v774
      %v776 = vsel %vm768, %v775, 0.0
      %777 = vadd.xlane.f32.xlu0 %v776
      %v778 = vpop.xlane.xlu0 %777
      %v779 = vmul.f32 %v778, %v772
      %v780 = vadd.f32 %v779, 1e-05
      %v781 = vrsqrt.pop %v780
      %v782 = vmul.f32 %v774, %v781
      %v784 = vlaneseq
      %v785 = vshrl.u32 %v784, 7
      %v786 = vsub.s32 0, %v785
      %v787 = vrot.slane %v766, %v786
      %v789 = vmul.f32 %v782, %v787
      %v791 = vlaneseq
      %v792 = vshrl.u32 %v791, 7
      %v793 = vsub.s32 0, %v792
      %v794 = vrot.slane %v767, %v793
      %v796 = vadd.f32 %v789, %v794
      %v797 = vld [vmem:[%s708] sm:$0xf]
      %v798 = vld [vmem:[%s708 + $0x4] sm:$0xf]
      %v799 = vld [vmem:[%s708 + $0x8] sm:$0xf]
      %v800 = vld [vmem:[%s708 + $0xc] sm:$0xf]
      %v801 = vld [vmem:[%s711] sm:$0x1]
      %v802 = vpack.c.bf16 %v796, %v796
      %v804 = vlaneseq
      %v805 = vshrl.u32 %v804, 7
      %v806 = vsub.s32 0, %v805
      %v807 = vrot.slane %v801, %v806
      %v813 = vunpack.c.l.b16 %v797
      %v814 = vunpack.c.l.b16 %v798
      %v815 = vunpack.c.l.b16 %v799
      %v816 = vunpack.c.l.b16 %v800
      %v817 = vpack.c.b16 %v814, %v813
      %v818 = vpack.c.b16 %v816, %v815
      %v822 = vsel %vm768, %v802, 0
      %824 = vmatprep.subr.bf16.mxu0 0
      %825 = vmatpush1.bf16.msra.mxu0 %v817
      %826 = vmatprep.subr.bf16.mxu0 0
      %827 = vmatpush1.bf16.msra.mxu0 %v818
      %828 = vmatprep.subr.bf16.mxu0 0
      %829 = vmatpush1.bf16.msra.mxu0 0
      %830 = vmatprep.subr.bf16.mxu0 0
      %831 = vmatpush1.bf16.msra.mxu0 0
      %832 = vmatprep.subr.bf16.mxu0 0
      %833 = vmatpush1.bf16.msra.mxu0 0
      %834 = vmatprep.subr.bf16.mxu0 0
      %835 = vmatpush1.bf16.msra.mxu0 0
      %836 = vmatprep.subr.bf16.mxu0 0
      %837 = vmatpush1.bf16.msra.mxu0 0
      %838 = vmatprep.subr.bf16.mxu0 0
      %839 = vmatpush1.bf16.msra.mxu0 0
      %840 = vmatprep.subr.bf16.mxu0 0
      %841 = vmatpush1.bf16.msra.mxu0 0
      %842 = vmatprep.subr.bf16.mxu0 0
      %843 = vmatpush1.bf16.msra.mxu0 0
      %844 = vmatprep.subr.bf16.mxu0 0
      %845 = vmatpush1.bf16.msra.mxu0 0
      %846 = vmatprep.subr.bf16.mxu0 0
      %847 = vmatpush1.bf16.msra.mxu0 0
      %848 = vmatprep.subr.bf16.mxu0 0
      %849 = vmatpush1.bf16.msra.mxu0 0
      %850 = vmatprep.subr.bf16.mxu0 0
      %851 = vmatpush1.bf16.msra.mxu0 0
      %852 = vmatprep.subr.bf16.mxu0 0
      %853 = vmatpush1.bf16.msra.mxu0 0
      %854 = vmatprep.subr.bf16.mxu0 0
      %855 = vmatpush1.bf16.msra.mxu0 0
      %856 = vmatprep.mubr.bf16.mxu0 0
      %857 = vmatmul.mubr.bf16.gmra.mrb[0].mxu0 %v822
      %v858 = vpop.f32.mrb[0].mxu0
      %v859 = vadd.f32 %v807, %v858
      %v860 = vpop.f32.mrb[0].mxu0
      %v861 = vpop.f32.mrb[0].mxu0
      %v862 = vpop.f32.mrb[0].mxu0
      %863 = vdwg.mxu0
      %v864 = vmul.f32 %v859, 0.35355338
      %v865 = vlaneseq
      %v866 = vshrl.u32 %v865, 7
      %v867 = vlaneseq
      %v868 = vand.u32 %v867, 127
      %vm869 = vcmp.gt.s32.totalorder %v868, %v866
      %v870 = vsel %vm869, -1e+30, 0.0
      %v871 = vpack.c.bf16 %v864, %v864
      %873 = vrot.lane.b32.xlu0 %v859, 96
      %v874 = vpop.permute.xlu0 %873
      %876 = vxpose.xlu0.b32.start [1/16] %v874, 128
      %877 = vxpose.xlu0.b32.cont [2/16] 0.0, 128
      %878 = vxpose.xlu0.b32.cont [3/16] 0.0, 128
      %879 = vxpose.xlu0.b32.cont [4/16] 0.0, 128
      %880 = vxpose.xlu0.b32.cont [5/16] 0.0, 128
      %881 = vxpose.xlu0.b32.cont [6/16] 0.0, 128
      %882 = vxpose.xlu0.b32.cont [7/16] 0.0, 128
      %883 = vxpose.xlu0.b32.cont [8/16] 0.0, 128
      %884 = vxpose.xlu0.b32.cont [9/16] 0.0, 128
      %885 = vxpose.xlu0.b32.cont [10/16] 0.0, 128
      %886 = vxpose.xlu0.b32.cont [11/16] 0.0, 128
      %887 = vxpose.xlu0.b32.cont [12/16] 0.0, 128
      %888 = vxpose.xlu0.b32.cont [13/16] 0.0, 128
      %889 = vxpose.xlu0.b32.cont [14/16] 0.0, 128
      %890 = vxpose.xlu0.b32.cont [15/16] 0.0, 128
      %891 = vxpose.xlu0.b32.end [16/16] 0.0, 128
      %v892 = vpop.trf.xlu0
      %v893 = vpop.trf.xlu0
      %v894 = vpop.trf.xlu0
      %v895 = vpop.trf.xlu0
      %v896 = vpop.trf.xlu0
      %v897 = vpop.trf.xlu0
      %v898 = vpop.trf.xlu0
      %v899 = vpop.trf.xlu0
      %v900 = vpop.trf.xlu0
      %v901 = vpop.trf.xlu0
      %v902 = vpop.trf.xlu0
      %v903 = vpop.trf.xlu0
      %v904 = vpop.trf.xlu0
      %v905 = vpop.trf.xlu0
      %v906 = vpop.trf.xlu0
      %v907 = vpop.trf.xlu0
      %v908 = vpack.c.bf16 %v892, %v892
      %v909 = vpack.c.bf16 %v859, %v859
      %vm910 = vcmask 64512
      %v912 = vsel %vm910, %v871, 0
      %vm914 = vcmask 1043456
      %v916 = vsel %vm914, %v908, 0
      %918 = vmatprep.subr.bf16.mxu0 0
      %919 = vmatpush1.bf16.msra.mxu0 %v916
      %920 = vmatprep.subr.bf16.mxu0 0
      %921 = vmatpush1.bf16.msra.mxu0 0
      %922 = vmatprep.subr.bf16.mxu0 0
      %923 = vmatpush1.bf16.msra.mxu0 0
      %924 = vmatprep.subr.bf16.mxu0 0
      %925 = vmatpush1.bf16.msra.mxu0 0
      %926 = vmatprep.subr.bf16.mxu0 0
      %927 = vmatpush1.bf16.msra.mxu0 0
      %928 = vmatprep.subr.bf16.mxu0 0
      %929 = vmatpush1.bf16.msra.mxu0 0
      %930 = vmatprep.subr.bf16.mxu0 0
      %931 = vmatpush1.bf16.msra.mxu0 0
      %932 = vmatprep.subr.bf16.mxu0 0
      %933 = vmatpush1.bf16.msra.mxu0 0
      %934 = vmatprep.subr.bf16.mxu0 0
      %935 = vmatpush1.bf16.msra.mxu0 0
      %936 = vmatprep.subr.bf16.mxu0 0
      %937 = vmatpush1.bf16.msra.mxu0 0
      %938 = vmatprep.subr.bf16.mxu0 0
      %939 = vmatpush1.bf16.msra.mxu0 0
      %940 = vmatprep.subr.bf16.mxu0 0
      %941 = vmatpush1.bf16.msra.mxu0 0
      %942 = vmatprep.subr.bf16.mxu0 0
      %943 = vmatpush1.bf16.msra.mxu0 0
      %944 = vmatprep.subr.bf16.mxu0 0
      %945 = vmatpush1.bf16.msra.mxu0 0
      %946 = vmatprep.subr.bf16.mxu0 0
      %947 = vmatpush1.bf16.msra.mxu0 0
      %948 = vmatprep.subr.bf16.mxu0 0
      %949 = vmatpush1.bf16.msra.mxu0 0
      %950 = vmatprep.mubr.bf16.mxu0 0
      %951 = vmatmul.mubr.bf16.gmra.mrb[0].mxu0 %v912
      %v952 = vpop.f32.mrb[0].mxu0
      %v953 = vadd.f32 %v870, %v952
      %v954 = vpop.f32.mrb[0].mxu0
      %v955 = vpop.f32.mrb[0].mxu0
      %v956 = vpop.f32.mrb[0].mxu0
      %957 = vdwg.mxu0
      %v958 = vsel %vm910, %v953, -inf
      %959 = vmax.xlane.f32.xlu0 %v958
      %v960 = vpop.xlane.xlu0 %959
      %v961 = vsub.f32 %v953, %v960
      %v962 = vmul.f32 %v961, 1.442695
      %v963 = vpow.pop %v962
      %v964 = vsel %vm910, %v963, 0.0
      %965 = vadd.xlane.f32.xlu0 %v964
      %v966 = vpop.xlane.xlu0 %965
      %v967 = vrcp.pop %v966
      %v968 = vmul.f32 %v963, %v967
      %v969 = vpack.c.bf16 %v968, %v968
      %971 = vrot.lane.b32.xlu0 %v909, 64
      %v972 = vpop.permute.xlu0 %971
      %v974 = vsel %vm910, %v969, 0
      %v977 = vsel %vm914, %v972, 0
      %979 = vmatprep.subr.bf16.mxu0 0
      %980 = vmatpush1.bf16.msra.mxu0 %v977
      %981 = vmatprep.subr.bf16.mxu0 0
      %982 = vmatpush1.bf16.msra.mxu0 0
      %983 = vmatprep.subr.bf16.mxu0 0
      %984 = vmatpush1.bf16.msra.mxu0 0
      %985 = vmatprep.subr.bf16.mxu0 0
      %986 = vmatpush1.bf16.msra.mxu0 0
      %987 = vmatprep.subr.bf16.mxu0 0
      %988 = vmatpush1.bf16.msra.mxu0 0
      %989 = vmatprep.subr.bf16.mxu0 0
      %990 = vmatpush1.bf16.msra.mxu0 0
      %991 = vmatprep.subr.bf16.mxu0 0
      %992 = vmatpush1.bf16.msra.mxu0 0
      %993 = vmatprep.subr.bf16.mxu0 0
      %994 = vmatpush1.bf16.msra.mxu0 0
      %995 = vmatprep.subr.bf16.mxu0 0
      %996 = vmatpush1.bf16.msra.mxu0 0
      %997 = vmatprep.subr.bf16.mxu0 0
      %998 = vmatpush1.bf16.msra.mxu0 0
      %999 = vmatprep.subr.bf16.mxu0 0
      %1000 = vmatpush1.bf16.msra.mxu0 0
      %1001 = vmatprep.subr.bf16.mxu0 0
      %1002 = vmatpush1.bf16.msra.mxu0 0
      %1003 = vmatprep.subr.bf16.mxu0 0
      %1004 = vmatpush1.bf16.msra.mxu0 0
      %1005 = vmatprep.subr.bf16.mxu0 0
      %1006 = vmatpush1.bf16.msra.mxu0 0
      %1007 = vmatprep.subr.bf16.mxu0 0
      %1008 = vmatpush1.bf16.msra.mxu0 0
      %1009 = vmatprep.subr.bf16.mxu0 0
      %1010 = vmatpush1.bf16.msra.mxu0 0
      %1011 = vmatprep.mubr.bf16.mxu0 0
      %1012 = vmatmul.mubr.bf16.gmra.mrb[0].mxu0 %v974
      %v1013 = vpop.f32.mrb[0].mxu0
      %v1014 = vadd.f32 0.0, %v1013
      %v1015 = vpop.f32.mrb[0].mxu0
      %v1016 = vpop.f32.mrb[0].mxu0
      %v1017 = vpop.f32.mrb[0].mxu0
      %1018 = vdwg.mxu0
      %1019 = vrot.lane.b32.xlu0 %v859, 88
      %v1020 = vpop.permute.xlu0 %1019
      %1022 = vxpose.xlu0.b32.start [1/16] %v1020, 128
      %1023 = vxpose.xlu0.b32.cont [2/16] 0.0, 128
      %1024 = vxpose.xlu0.b32.cont [3/16] 0.0, 128
      %1025 = vxpose.xlu0.b32.cont [4/16] 0.0, 128
      %1026 = vxpose.xlu0.b32.cont [5/16] 0.0, 128
      %1027 = vxpose.xlu0.b32.cont [6/16] 0.0, 128
      %1028 = vxpose.xlu0.b32.cont [7/16] 0.0, 128
      %1029 = vxpose.xlu0.b32.cont [8/16] 0.0, 128
      %1030 = vxpose.xlu0.b32.cont [9/16] 0.0, 128
      %1031 = vxpose.xlu0.b32.cont [10/16] 0.0, 128
      %1032 = vxpose.xlu0.b32.cont [11/16] 0.0, 128
      %1033 = vxpose.xlu0.b32.cont [12/16] 0.0, 128
      %1034 = vxpose.xlu0.b32.cont [13/16] 0.0, 128
      %1035 = vxpose.xlu0.b32.cont [14/16] 0.0, 128
      %1036 = vxpose.xlu0.b32.cont [15/16] 0.0, 128
      %1037 = vxpose.xlu0.b32.end [16/16] 0.0, 128
      %v1038 = vpop.trf.xlu0
      %v1039 = vpop.trf.xlu0
      %v1040 = vpop.trf.xlu0
      %v1041 = vpop.trf.xlu0
      %v1042 = vpop.trf.xlu0
      %v1043 = vpop.trf.xlu0
      %v1044 = vpop.trf.xlu0
      %v1045 = vpop.trf.xlu0
      %v1046 = vpop.trf.xlu0
      %v1047 = vpop.trf.xlu0
      %v1048 = vpop.trf.xlu0
      %v1049 = vpop.trf.xlu0
      %v1050 = vpop.trf.xlu0
      %v1051 = vpop.trf.xlu0
      %v1052 = vpop.trf.xlu0
      %v1053 = vpop.trf.xlu0
      %v1054 = vpack.c.bf16 %v1038, %v1038
      %1056 = vrot.lane.b32.xlu0 %v871, 120
      %v1057 = vpop.permute.xlu0 %1056
      %v1059 = vsel %vm910, %v1057, 0
      %v1062 = vsel %vm914, %v1054, 0
      %1064 = vmatprep.subr.bf16.mxu0 0
      %1065 = vmatpush1.bf16.msra.mxu0 %v1062
      %1066 = vmatprep.subr.bf16.mxu0 0
      %1067 = vmatpush1.bf16.msra.mxu0 0
      %1068 = vmatprep.subr.bf16.mxu0 0
      %1069 = vmatpush1.bf16.msra.mxu0 0
      %1070 = vmatprep.subr.bf16.mxu0 0
      %1071 = vmatpush1.bf16.msra.mxu0 0
      %1072 = vmatprep.subr.bf16.mxu0 0
      %1073 = vmatpush1.bf16.msra.mxu0 0
      %1074 = vmatprep.subr.bf16.mxu0 0
      %1075 = vmatpush1.bf16.msra.mxu0 0
      %1076 = vmatprep.subr.bf16.mxu0 0
      %1077 = vmatpush1.bf16.msra.mxu0 0
      %1078 = vmatprep.subr.bf16.mxu0 0
      %1079 = vmatpush1.bf16.msra.mxu0 0
      %1080 = vmatprep.subr.bf16.mxu0 0
      %1081 = vmatpush1.bf16.msra.mxu0 0
      %1082 = vmatprep.subr.bf16.mxu0 0
      %1083 = vmatpush1.bf16.msra.mxu0 0
      %1084 = vmatprep.subr.bf16.mxu0 0
      %1085 = vmatpush1.bf16.msra.mxu0 0
      %1086 = vmatprep.subr.bf16.mxu0 0
      %1087 = vmatpush1.bf16.msra.mxu0 0
      %1088 = vmatprep.subr.bf16.mxu0 0
      %1089 = vmatpush1.bf16.msra.mxu0 0
      %1090 = vmatprep.subr.bf16.mxu0 0
      %1091 = vmatpush1.bf16.msra.mxu0 0
      %1092 = vmatprep.subr.bf16.mxu0 0
      %1093 = vmatpush1.bf16.msra.mxu0 0
      %1094 = vmatprep.subr.bf16.mxu0 0
      %1095 = vmatpush1.bf16.msra.mxu0 0
      %1096 = vmatprep.mubr.bf16.mxu0 0
      %1097 = vmatmul.mubr.bf16.gmra.mrb[0].mxu0 %v1059
      %v1098 = vpop.f32.mrb[0].mxu0
      %v1099 = vadd.f32 %v870, %v1098
      %v1100 = vpop.f32.mrb[0].mxu0
      %v1101 = vpop.f32.mrb[0].mxu0
      %v1102 = vpop.f32.mrb[0].mxu0
      %1103 = vdwg.mxu0
      %v1104 = vsel %vm910, %v1099, -inf
      %1105 = vmax.xlane.f32.xlu0 %v1104
      %v1106 = vpop.xlane.xlu0 %1105
      %v1107 = vsub.f32 %v1099, %v1106
      %v1108 = vmul.f32 %v1107, 1.442695
      %v1109 = vpow.pop %v1108
      %v1110 = vsel %vm910, %v1109, 0.0
      %1111 = vadd.xlane.f32.xlu0 %v1110
      %v1112 = vpop.xlane.xlu0 %1111
      %v1113 = vrcp.pop %v1112
      %v1114 = vmul.f32 %v1109, %v1113
      %v1115 = vpack.c.bf16 %v1114, %v1114
      %1116 = vrot.lane.b32.xlu0 %v909, 56
      %v1117 = vpop.permute.xlu0 %1116
      %v1119 = vsel %vm910, %v1115, 0
      %v1122 = vsel %vm914, %v1117, 0
      %1124 = vmatprep.subr.bf16.mxu0 0
      %1125 = vmatpush1.bf16.msra.mxu0 %v1122
      %1126 = vmatprep.subr.bf16.mxu0 0
      %1127 = vmatpush1.bf16.msra.mxu0 0
      %1128 = vmatprep.subr.bf16.mxu0 0
      %1129 = vmatpush1.bf16.msra.mxu0 0
      %1130 = vmatprep.subr.bf16.mxu0 0
      %1131 = vmatpush1.bf16.msra.mxu0 0
      %1132 = vmatprep.subr.bf16.mxu0 0
      %1133 = vmatpush1.bf16.msra.mxu0 0
      %1134 = vmatprep.subr.bf16.mxu0 0
      %1135 = vmatpush1.bf16.msra.mxu0 0
      %1136 = vmatprep.subr.bf16.mxu0 0
      %1137 = vmatpush1.bf16.msra.mxu0 0
      %1138 = vmatprep.subr.bf16.mxu0 0
      %1139 = vmatpush1.bf16.msra.mxu0 0
      %1140 = vmatprep.subr.bf16.mxu0 0
      %1141 = vmatpush1.bf16.msra.mxu0 0
      %1142 = vmatprep.subr.bf16.mxu0 0
      %1143 = vmatpush1.bf16.msra.mxu0 0
      %1144 = vmatprep.subr.bf16.mxu0 0
      %1145 = vmatpush1.bf16.msra.mxu0 0
      %1146 = vmatprep.subr.bf16.mxu0 0
      %1147 = vmatpush1.bf16.msra.mxu0 0
      %1148 = vmatprep.subr.bf16.mxu0 0
      %1149 = vmatpush1.bf16.msra.mxu0 0
      %1150 = vmatprep.subr.bf16.mxu0 0
      %1151 = vmatpush1.bf16.msra.mxu0 0
      %1152 = vmatprep.subr.bf16.mxu0 0
      %1153 = vmatpush1.bf16.msra.mxu0 0
      %1154 = vmatprep.subr.bf16.mxu0 0
      %1155 = vmatpush1.bf16.msra.mxu0 0
      %1156 = vmatprep.mubr.bf16.mxu0 0
      %1157 = vmatmul.mubr.bf16.gmra.mrb[0].mxu0 %v1119
      %v1158 = vpop.f32.mrb[0].mxu0
      %v1159 = vadd.f32 0.0, %v1158
      %v1160 = vpop.f32.mrb[0].mxu0
      %v1161 = vpop.f32.mrb[0].mxu0
      %v1162 = vpop.f32.mrb[0].mxu0
      %1163 = vdwg.mxu0
      %1164 = vrot.lane.b32.xlu0 %v859, 80
      %v1165 = vpop.permute.xlu0 %1164
      %1167 = vxpose.xlu0.b32.start [1/16] %v1165, 128
      %1168 = vxpose.xlu0.b32.cont [2/16] 0.0, 128
      %1169 = vxpose.xlu0.b32.cont [3/16] 0.0, 128
      %1170 = vxpose.xlu0.b32.cont [4/16] 0.0, 128
      %1171 = vxpose.xlu0.b32.cont [5/16] 0.0, 128
      %1172 = vxpose.xlu0.b32.cont [6/16] 0.0, 128
      %1173 = vxpose.xlu0.b32.cont [7/16] 0.0, 128
      %1174 = vxpose.xlu0.b32.cont [8/16] 0.0, 128
      %1175 = vxpose.xlu0.b32.cont [9/16] 0.0, 128
      %1176 = vxpose.xlu0.b32.cont [10/16] 0.0, 128
      %1177 = vxpose.xlu0.b32.cont [11/16] 0.0, 128
      %1178 = vxpose.xlu0.b32.cont [12/16] 0.0, 128
      %1179 = vxpose.xlu0.b32.cont [13/16] 0.0, 128
      %1180 = vxpose.xlu0.b32.cont [14/16] 0.0, 128
      %1181 = vxpose.xlu0.b32.cont [15/16] 0.0, 128
      %1182 = vxpose.xlu0.b32.end [16/16] 0.0, 128
      %v1183 = vpop.trf.xlu0
      %v1184 = vpop.trf.xlu0
      %v1185 = vpop.trf.xlu0
      %v1186 = vpop.trf.xlu0
      %v1187 = vpop.trf.xlu0
      %v1188 = vpop.trf.xlu0
      %v1189 = vpop.trf.xlu0
      %v1190 = vpop.trf.xlu0
      %v1191 = vpop.trf.xlu0
      %v1192 = vpop.trf.xlu0
      %v1193 = vpop.trf.xlu0
      %v1194 = vpop.trf.xlu0
      %v1195 = vpop.trf.xlu0
      %v1196 = vpop.trf.xlu0
      %v1197 = vpop.trf.xlu0
      %v1198 = vpop.trf.xlu0
      %v1199 = vpack.c.bf16 %v1183, %v1183
      %1200 = vrot.lane.b32.xlu0 %v871, 112
      %v1201 = vpop.permute.xlu0 %1200
      %v1203 = vsel %vm910, %v1201, 0
      %v1206 = vsel %vm914, %v1199, 0
      %1208 = vmatprep.subr.bf16.mxu0 0
      %1209 = vmatpush1.bf16.msra.mxu0 %v1206
      %1210 = vmatprep.subr.bf16.mxu0 0
      %1211 = vmatpush1.bf16.msra.mxu0 0
      %1212 = vmatprep.subr.bf16.mxu0 0
      %1213 = vmatpush1.bf16.msra.mxu0 0
      %1214 = vmatprep.subr.bf16.mxu0 0
      %1215 = vmatpush1.bf16.msra.mxu0 0
      %1216 = vmatprep.subr.bf16.mxu0 0
      %1217 = vmatpush1.bf16.msra.mxu0 0
      %1218 = vmatprep.subr.bf16.mxu0 0
      %1219 = vmatpush1.bf16.msra.mxu0 0
      %1220 = vmatprep.subr.bf16.mxu0 0
      %1221 = vmatpush1.bf16.msra.mxu0 0
      %1222 = vmatprep.subr.bf16.mxu0 0
      %1223 = vmatpush1.bf16.msra.mxu0 0
      %1224 = vmatprep.subr.bf16.mxu0 0
      %1225 = vmatpush1.bf16.msra.mxu0 0
      %1226 = vmatprep.subr.bf16.mxu0 0
      %1227 = vmatpush1.bf16.msra.mxu0 0
      %1228 = vmatprep.subr.bf16.mxu0 0
      %1229 = vmatpush1.bf16.msra.mxu0 0
      %1230 = vmatprep.subr.bf16.mxu0 0
      %1231 = vmatpush1.bf16.msra.mxu0 0
      %1232 = vmatprep.subr.bf16.mxu0 0
      %1233 = vmatpush1.bf16.msra.mxu0 0
      %1234 = vmatprep.subr.bf16.mxu0 0
      %1235 = vmatpush1.bf16.msra.mxu0 0
      %1236 = vmatprep.subr.bf16.mxu0 0
      %1237 = vmatpush1.bf16.msra.mxu0 0
      %1238 = vmatprep.subr.bf16.mxu0 0
      %1239 = vmatpush1.bf16.msra.mxu0 0
      %1240 = vmatprep.mubr.bf16.mxu0 0
      %1241 = vmatmul.mubr.bf16.gmra.mrb[0].mxu0 %v1203
      %v1242 = vpop.f32.mrb[0].mxu0
      %v1243 = vadd.f32 %v870, %v1242
      %v1244 = vpop.f32.mrb[0].mxu0
      %v1245 = vpop.f32.mrb[0].mxu0
      %v1246 = vpop.f32.mrb[0].mxu0
      %1247 = vdwg.mxu0
      %v1248 = vsel %vm910, %v1243, -inf
      %1249 = vmax.xlane.f32.xlu0 %v1248
      %v1250 = vpop.xlane.xlu0 %1249
      %v1251 = vsub.f32 %v1243, %v1250
      %v1252 = vmul.f32 %v1251, 1.442695
      %v1253 = vpow.pop %v1252
      %v1254 = vsel %vm910, %v1253, 0.0
      %1255 = vadd.xlane.f32.xlu0 %v1254
      %v1256 = vpop.xlane.xlu0 %1255
      %v1257 = vrcp.pop %v1256
      %v1258 = vmul.f32 %v1253, %v1257
      %v1259 = vpack.c.bf16 %v1258, %v1258
      %1260 = vrot.lane.b32.xlu0 %v909, 48
      %v1261 = vpop.permute.xlu0 %1260
      %v1263 = vsel %vm910, %v1259, 0
      %v1266 = vsel %vm914, %v1261, 0
      %1268 = vmatprep.subr.bf16.mxu0 0
      %1269 = vmatpush1.bf16.msra.mxu0 %v1266
      %1270 = vmatprep.subr.bf16.mxu0 0
      %1271 = vmatpush1.bf16.msra.mxu0 0
      %1272 = vmatprep.subr.bf16.mxu0 0
      %1273 = vmatpush1.bf16.msra.mxu0 0
      %1274 = vmatprep.subr.bf16.mxu0 0
      %1275 = vmatpush1.bf16.msra.mxu0 0
      %1276 = vmatprep.subr.bf16.mxu0 0
      %1277 = vmatpush1.bf16.msra.mxu0 0
      %1278 = vmatprep.subr.bf16.mxu0 0
      %1279 = vmatpush1.bf16.msra.mxu0 0
      %1280 = vmatprep.subr.bf16.mxu0 0
      %1281 = vmatpush1.bf16.msra.mxu0 0
      %1282 = vmatprep.subr.bf16.mxu0 0
      %1283 = vmatpush1.bf16.msra.mxu0 0
      %1284 = vmatprep.subr.bf16.mxu0 0
      %1285 = vmatpush1.bf16.msra.mxu0 0
      %1286 = vmatprep.subr.bf16.mxu0 0
      %1287 = vmatpush1.bf16.msra.mxu0 0
      %1288 = vmatprep.subr.bf16.mxu0 0
      %1289 = vmatpush1.bf16.msra.mxu0 0
      %1290 = vmatprep.subr.bf16.mxu0 0
      %1291 = vmatpush1.bf16.msra.mxu0 0
      %1292 = vmatprep.subr.bf16.mxu0 0
      %1293 = vmatpush1.bf16.msra.mxu0 0
      %1294 = vmatprep.subr.bf16.mxu0 0
      %1295 = vmatpush1.bf16.msra.mxu0 0
      %1296 = vmatprep.subr.bf16.mxu0 0
      %1297 = vmatpush1.bf16.msra.mxu0 0
      %1298 = vmatprep.subr.bf16.mxu0 0
      %1299 = vmatpush1.bf16.msra.mxu0 0
      %1300 = vmatprep.mubr.bf16.mxu0 0
      %1301 = vmatmul.mubr.bf16.gmra.mrb[0].mxu0 %v1263
      %v1302 = vpop.f32.mrb[0].mxu0
      %v1303 = vadd.f32 0.0, %v1302
      %v1304 = vpop.f32.mrb[0].mxu0
      %v1305 = vpop.f32.mrb[0].mxu0
      %v1306 = vpop.f32.mrb[0].mxu0
      %1307 = vdwg.mxu0
      %1308 = vrot.lane.b32.xlu0 %v859, 72
      %v1309 = vpop.permute.xlu0 %1308
      %1311 = vxpose.xlu0.b32.start [1/16] %v1309, 128
      %1312 = vxpose.xlu0.b32.cont [2/16] 0.0, 128
      %1313 = vxpose.xlu0.b32.cont [3/16] 0.0, 128
      %1314 = vxpose.xlu0.b32.cont [4/16] 0.0, 128
      %1315 = vxpose.xlu0.b32.cont [5/16] 0.0, 128
      %1316 = vxpose.xlu0.b32.cont [6/16] 0.0, 128
      %1317 = vxpose.xlu0.b32.cont [7/16] 0.0, 128
      %1318 = vxpose.xlu0.b32.cont [8/16] 0.0, 128
      %1319 = vxpose.xlu0.b32.cont [9/16] 0.0, 128
      %1320 = vxpose.xlu0.b32.cont [10/16] 0.0, 128
      %1321 = vxpose.xlu0.b32.cont [11/16] 0.0, 128
      %1322 = vxpose.xlu0.b32.cont [12/16] 0.0, 128
      %1323 = vxpose.xlu0.b32.cont [13/16] 0.0, 128
      %1324 = vxpose.xlu0.b32.cont [14/16] 0.0, 128
      %1325 = vxpose.xlu0.b32.cont [15/16] 0.0, 128
      %1326 = vxpose.xlu0.b32.end [16/16] 0.0, 128
      %v1327 = vpop.trf.xlu0
      %v1328 = vpop.trf.xlu0
      %v1329 = vpop.trf.xlu0
      %v1330 = vpop.trf.xlu0
      %v1331 = vpop.trf.xlu0
      %v1332 = vpop.trf.xlu0
      %v1333 = vpop.trf.xlu0
      %v1334 = vpop.trf.xlu0
      %v1335 = vpop.trf.xlu0
      %v1336 = vpop.trf.xlu0
      %v1337 = vpop.trf.xlu0
      %v1338 = vpop.trf.xlu0
      %v1339 = vpop.trf.xlu0
      %v1340 = vpop.trf.xlu0
      %v1341 = vpop.trf.xlu0
      %v1342 = vpop.trf.xlu0
      %v1343 = vpack.c.bf16 %v1327, %v1327
      %1344 = vrot.lane.b32.xlu0 %v871, 104
      %v1345 = vpop.permute.xlu0 %1344
      %v1347 = vsel %vm910, %v1345, 0
      %v1350 = vsel %vm914, %v1343, 0
      %1352 = vmatprep.subr.bf16.mxu0 0
      %1353 = vmatpush1.bf16.msra.mxu0 %v1350
      %1354 = vmatprep.subr.bf16.mxu0 0
      %1355 = vmatpush1.bf16.msra.mxu0 0
      %1356 = vmatprep.subr.bf16.mxu0 0
      %1357 = vmatpush1.bf16.msra.mxu0 0
      %1358 = vmatprep.subr.bf16.mxu0 0
      %1359 = vmatpush1.bf16.msra.mxu0 0
      %1360 = vmatprep.subr.bf16.mxu0 0
      %1361 = vmatpush1.bf16.msra.mxu0 0
      %1362 = vmatprep.subr.bf16.mxu0 0
      %1363 = vmatpush1.bf16.msra.mxu0 0
      %1364 = vmatprep.subr.bf16.mxu0 0
      %1365 = vmatpush1.bf16.msra.mxu0 0
      %1366 = vmatprep.subr.bf16.mxu0 0
      %1367 = vmatpush1.bf16.msra.mxu0 0
      %1368 = vmatprep.subr.bf16.mxu0 0
      %1369 = vmatpush1.bf16.msra.mxu0 0
      %1370 = vmatprep.subr.bf16.mxu0 0
      %1371 = vmatpush1.bf16.msra.mxu0 0
      %1372 = vmatprep.subr.bf16.mxu0 0
      %1373 = vmatpush1.bf16.msra.mxu0 0
      %1374 = vmatprep.subr.bf16.mxu0 0
      %1375 = vmatpush1.bf16.msra.mxu0 0
      %1376 = vmatprep.subr.bf16.mxu0 0
      %1377 = vmatpush1.bf16.msra.mxu0 0
      %1378 = vmatprep.subr.bf16.mxu0 0
      %1379 = vmatpush1.bf16.msra.mxu0 0
      %1380 = vmatprep.subr.bf16.mxu0 0
      %1381 = vmatpush1.bf16.msra.mxu0 0
      %1382 = vmatprep.subr.bf16.mxu0 0
      %1383 = vmatpush1.bf16.msra.mxu0 0
      %1384 = vmatprep.mubr.bf16.mxu0 0
      %1385 = vmatmul.mubr.bf16.gmra.mrb[0].mxu0 %v1347
      %v1386 = vpop.f32.mrb[0].mxu0
      %v1387 = vadd.f32 %v870, %v1386
      %v1388 = vpop.f32.mrb[0].mxu0
      %v1389 = vpop.f32.mrb[0].mxu0
      %v1390 = vpop.f32.mrb[0].mxu0
      %1391 = vdwg.mxu0
      %v1392 = vsel %vm910, %v1387, -inf
      %1393 = vmax.xlane.f32.xlu0 %v1392
      %v1394 = vpop.xlane.xlu0 %1393
      %v1395 = vsub.f32 %v1387, %v1394
      %v1396 = vmul.f32 %v1395, 1.442695
      %v1397 = vpow.pop %v1396
      %v1398 = vsel %vm910, %v1397, 0.0
      %1399 = vadd.xlane.f32.xlu0 %v1398
      %v1400 = vpop.xlane.xlu0 %1399
      %v1401 = vrcp.pop %v1400
      %v1402 = vmul.f32 %v1397, %v1401
      %v1403 = vpack.c.bf16 %v1402, %v1402
      %1404 = vrot.lane.b32.xlu0 %v909, 40
      %v1405 = vpop.permute.xlu0 %1404
      %v1407 = vsel %vm910, %v1403, 0
      %v1410 = vsel %vm914, %v1405, 0
      %1412 = vmatprep.subr.bf16.mxu0 0
      %1413 = vmatpush1.bf16.msra.mxu0 %v1410
      %1414 = vmatprep.subr.bf16.mxu0 0
      %1415 = vmatpush1.bf16.msra.mxu0 0
      %1416 = vmatprep.subr.bf16.mxu0 0
      %1417 = vmatpush1.bf16.msra.mxu0 0
      %1418 = vmatprep.subr.bf16.mxu0 0
      %1419 = vmatpush1.bf16.msra.mxu0 0
      %1420 = vmatprep.subr.bf16.mxu0 0
      %1421 = vmatpush1.bf16.msra.mxu0 0
      %1422 = vmatprep.subr.bf16.mxu0 0
      %1423 = vmatpush1.bf16.msra.mxu0 0
      %1424 = vmatprep.subr.bf16.mxu0 0
      %1425 = vmatpush1.bf16.msra.mxu0 0
      %1426 = vmatprep.subr.bf16.mxu0 0
      %1427 = vmatpush1.bf16.msra.mxu0 0
      %1428 = vmatprep.subr.bf16.mxu0 0
      %1429 = vmatpush1.bf16.msra.mxu0 0
      %1430 = vmatprep.subr.bf16.mxu0 0
      %1431 = vmatpush1.bf16.msra.mxu0 0
      %1432 = vmatprep.subr.bf16.mxu0 0
      %1433 = vmatpush1.bf16.msra.mxu0 0
      %1434 = vmatprep.subr.bf16.mxu0 0
      %1435 = vmatpush1.bf16.msra.mxu0 0
      %1436 = vmatprep.subr.bf16.mxu0 0
      %1437 = vmatpush1.bf16.msra.mxu0 0
      %1438 = vmatprep.subr.bf16.mxu0 0
      %1439 = vmatpush1.bf16.msra.mxu0 0
      %1440 = vmatprep.subr.bf16.mxu0 0
      %1441 = vmatpush1.bf16.msra.mxu0 0
      %1442 = vmatprep.subr.bf16.mxu0 0
      %1443 = vmatpush1.bf16.msra.mxu0 0
      %1444 = vmatprep.mubr.bf16.mxu0 0
      %1445 = vmatmul.mubr.bf16.gmra.mrb[0].mxu0 %v1407
      %v1446 = vpop.f32.mrb[0].mxu0
      %v1447 = vadd.f32 0.0, %v1446
      %v1448 = vpop.f32.mrb[0].mxu0
      %v1449 = vpop.f32.mrb[0].mxu0
      %v1450 = vpop.f32.mrb[0].mxu0
      %1451 = vdwg.mxu0
      %1453 = vrot.lane.b32.xlu0 %v1159, 8
      %v1454 = vpop.permute.xlu0 %1453
      %1457 = vrot.lane.b32.xlu0 %v1303, 16
      %v1458 = vpop.permute.xlu0 %1457
      %1461 = vrot.lane.b32.xlu0 %v1447, 24
      %v1462 = vpop.permute.xlu0 %1461
      %v1464 = vsel %vm910, %v1014, %v1454
      %vm1465 = vcmask 130048
      %v1466 = vsel %vm1465, %v1464, %v1458
      %vm1467 = vcmask 195584
      %v1468 = vsel %vm1467, %v1466, %v1462
      %v1469 = vld [vmem:[%s716] sm:$0xf]
      %v1470 = vld [vmem:[%s716 + $0x4] sm:$0xf]
      %v1471 = vld [vmem:[%s716 + $0x8] sm:$0xf]
      %v1472 = vld [vmem:[%s716 + $0xc] sm:$0xf]
      %v1473 = vld [vmem:[%s719] sm:$0x1]
      %v1474 = vpack.c.bf16 %v1468, %v1468
      %v1476 = vlaneseq
      %v1477 = vshrl.u32 %v1476, 7
      %v1478 = vsub.s32 0, %v1477
      %v1479 = vrot.slane %v1473, %v1478
      %v1485 = vunpack.c.l.b16 %v1469
      %v1486 = vunpack.c.l.b16 %v1470
      %v1487 = vunpack.c.l.b16 %v1471
      %v1488 = vunpack.c.l.b16 %v1472
      %v1489 = vpack.c.b16 %v1486, %v1485
      %v1490 = vpack.c.b16 %v1488, %v1487
      %v1494 = vsel %vm768, %v1474, 0
      %1496 = vmatprep.subr.bf16.mxu0 0
      %1497 = vmatpush1.bf16.msra.mxu0 %v1489
      %1498 = vmatprep.subr.bf16.mxu0 0
      %1499 = vmatpush1.bf16.msra.mxu0 %v1490
      %1500 = vmatprep.subr.bf16.mxu0 0
      %1501 = vmatpush1.bf16.msra.mxu0 0
      %1502 = vmatprep.subr.bf16.mxu0 0
      %1503 = vmatpush1.bf16.msra.mxu0 0
      %1504 = vmatprep.subr.bf16.mxu0 0
      %1505 = vmatpush1.bf16.msra.mxu0 0
      %1506 = vmatprep.subr.bf16.mxu0 0
      %1507 = vmatpush1.bf16.msra.mxu0 0
      %1508 = vmatprep.subr.bf16.mxu0 0
      %1509 = vmatpush1.bf16.msra.mxu0 0
      %1510 = vmatprep.subr.bf16.mxu0 0
      %1511 = vmatpush1.bf16.msra.mxu0 0
      %1512 = vmatprep.subr.bf16.mxu0 0
      %1513 = vmatpush1.bf16.msra.mxu0 0
      %1514 = vmatprep.subr.bf16.mxu0 0
      %1515 = vmatpush1.bf16.msra.mxu0 0
      %1516 = vmatprep.subr.bf16.mxu0 0
      %1517 = vmatpush1.bf16.msra.mxu0 0
      %1518 = vmatprep.subr.bf16.mxu0 0
      %1519 = vmatpush1.bf16.msra.mxu0 0
      %1520 = vmatprep.subr.bf16.mxu0 0
      %1521 = vmatpush1.bf16.msra.mxu0 0
      %1522 = vmatprep.subr.bf16.mxu0 0
      %1523 = vmatpush1.bf16.msra.mxu0 0
      %1524 = vmatprep.subr.bf16.mxu0 0
      %1525 = vmatpush1.bf16.msra.mxu0 0
      %1526 = vmatprep.subr.bf16.mxu0 0
      %1527 = vmatpush1.bf16.msra.mxu0 0
      %1528 = vmatprep.mubr.bf16.mxu0 0
      %1529 = vmatmul.mubr.bf16.gmra.mrb[0].mxu0 %v1494
      %v1530 = vpop.f32.mrb[0].mxu0
      %v1531 = vadd.f32 %v1479, %v1530
      %v1532 = vpop.f32.mrb[0].mxu0
      %v1533 = vpop.f32.mrb[0].mxu0
      %v1534 = vpop.f32.mrb[0].mxu0
      %1535 = vdwg.mxu0
      %v1536 = vadd.f32 %v765, %v1531
      %v1537 = vld [vmem:[%s722] sm:$0x1]
      %v1538 = vld [vmem:[%s725] sm:$0x1]
      %v1539 = vsel %vm768, %v1536, 0.0
      %1540 = vadd.xlane.f32.xlu0 %v1539
      %v1541 = vpop.xlane.xlu0 %1540
      %v1542 = vmul.f32 %v1541, %v772
      %v1543 = vsub.f32 %v1536, %v1542
      %v1544 = vmul.f32 %v1543, %v1543
      %v1545 = vsel %vm768, %v1544, 0.0
      %1546 = vadd.xlane.f32.xlu0 %v1545
      %v1547 = vpop.xlane.xlu0 %1546
      %v1548 = vmul.f32 %v1547, %v772
      %v1549 = vadd.f32 %v1548, 1e-05
      %v1550 = vrsqrt.pop %v1549
      %v1551 = vmul.f32 %v1543, %v1550
      %v1553 = vlaneseq
      %v1554 = vshrl.u32 %v1553, 7
      %v1555 = vsub.s32 0, %v1554
      %v1556 = vrot.slane %v1537, %v1555
      %v1558 = vmul.f32 %v1551, %v1556
      %v1560 = vlaneseq
      %v1561 = vshrl.u32 %v1560, 7
      %v1562 = vsub.s32 0, %v1561
      %v1563 = vrot.slane %v1538, %v1562
      %v1565 = vadd.f32 %v1558, %v1563
      %v1566 = vld [vmem:[%s730] sm:$0xf]
      %v1567 = vld [vmem:[%s730 + $0x4] sm:$0xf]
      %v1568 = vld [vmem:[%s730 + $0x8] sm:$0xf]
      %v1569 = vld [vmem:[%s730 + $0xc] sm:$0xf]
      %v1570 = vld [vmem:[%s733] sm:$0x1]
      %v1571 = vpack.c.bf16 %v1565, %v1565
      %v1573 = vlaneseq
      %v1574 = vshrl.u32 %v1573, 7
      %v1575 = vsub.s32 0, %v1574
      %v1576 = vrot.slane %v1570, %v1575
      %v1582 = vunpack.c.l.b16 %v1566
      %v1583 = vunpack.c.l.b16 %v1567
      %v1584 = vunpack.c.l.b16 %v1568
      %v1585 = vunpack.c.l.b16 %v1569
      %v1586 = vpack.c.b16 %v1583, %v1582
      %v1587 = vpack.c.b16 %v1585, %v1584
      %v1591 = vsel %vm768, %v1571, 0
      %1593 = vmatprep.subr.bf16.mxu0 0
      %1594 = vmatpush1.bf16.msra.mxu0 %v1586
      %1595 = vmatprep.subr.bf16.mxu0 0
      %1596 = vmatpush1.bf16.msra.mxu0 %v1587
      %1597 = vmatprep.subr.bf16.mxu0 0
      %1598 = vmatpush1.bf16.msra.mxu0 0
      %1599 = vmatprep.subr.bf16.mxu0 0
      %1600 = vmatpush1.bf16.msra.mxu0 0
      %1601 = vmatprep.subr.bf16.mxu0 0
      %1602 = vmatpush1.bf16.msra.mxu0 0
      %1603 = vmatprep.subr.bf16.mxu0 0
      %1604 = vmatpush1.bf16.msra.mxu0 0
      %1605 = vmatprep.subr.bf16.mxu0 0
      %1606 = vmatpush1.bf16.msra.mxu0 0
      %1607 = vmatprep.subr.bf16.mxu0 0
      %1608 = vmatpush1.bf16.msra.mxu0 0
      %1609 = vmatprep.subr.bf16.mxu0 0
      %1610 = vmatpush1.bf16.msra.mxu0 0
      %1611 = vmatprep.subr.bf16.mxu0 0
      %1612 = vmatpush1.bf16.msra.mxu0 0
      %1613 = vmatprep.subr.bf16.mxu0 0
      %1614 = vmatpush1.bf16.msra.mxu0 0
      %1615 = vmatprep.subr.bf16.mxu0 0
      %1616 = vmatpush1.bf16.msra.mxu0 0
      %1617 = vmatprep.subr.bf16.mxu0 0
      %1618 = vmatpush1.bf16.msra.mxu0 0
      %1619 = vmatprep.subr.bf16.mxu0 0
      %1620 = vmatpush1.bf16.msra.mxu0 0
      %1621 = vmatprep.subr.bf16.mxu0 0
      %1622 = vmatpush1.bf16.msra.mxu0 0
      %1623 = vmatprep.subr.bf16.mxu0 0
      %1624 = vmatpush1.bf16.msra.mxu0 0
      %1625 = vmatprep.mubr.bf16.mxu0 0
      %1626 = vmatmul.mubr.bf16.gmra.mrb[0].mxu0 %v1591
      %v1627 = vpop.f32.mrb[0].mxu0
      %v1628 = vadd.f32 %v1576, %v1627
      %v1629 = vpop.f32.mrb[0].mxu0
      %v1630 = vpop.f32.mrb[0].mxu0
      %v1631 = vpop.f32.mrb[0].mxu0
      %1632 = vdwg.mxu0
      %v1633 = vmul.f32 %v1628, 1.702
      %v1634 = vxor.u32 %v1633, 2147483648
      %v1635 = vmul.f32 %v1634, 1.442695
      %v1636 = vpow.pop %v1635
      %v1637 = vadd.f32 %v1636, 1.0
      %v1638 = vrcp.pop %v1637
      %v1639 = vmul.f32 1.0, %v1638
      %v1640 = vmul.f32 %v1628, %v1639
      %v1641 = vld [vmem:[%s738] sm:$0xf]
      %v1642 = vld [vmem:[%s738 + $0x4] sm:$0xf]
      %v1643 = vld [vmem:[%s738 + $0x8] sm:$0xf]
      %v1644 = vld [vmem:[%s738 + $0xc] sm:$0xf]
      %v1645 = vld [vmem:[%s738 + $0x10] sm:$0xf]
      %v1646 = vld [vmem:[%s738 + $0x14] sm:$0xf]
      %v1647 = vld [vmem:[%s738 + $0x18] sm:$0xf]
      %v1648 = vld [vmem:[%s738 + $0x1c] sm:$0xf]
      %v1649 = vld [vmem:[%s738 + $0x20] sm:$0xf]
      %v1650 = vld [vmem:[%s738 + $0x24] sm:$0xf]
      %v1651 = vld [vmem:[%s738 + $0x28] sm:$0xf]
      %v1652 = vld [vmem:[%s738 + $0x2c] sm:$0xf]
      %v1653 = vld [vmem:[%s738 + $0x30] sm:$0xf]
      %v1654 = vld [vmem:[%s738 + $0x34] sm:$0xf]
      %v1655 = vld [vmem:[%s738 + $0x38] sm:$0xf]
      %v1656 = vld [vmem:[%s738 + $0x3c] sm:$0xf]
      %v1657 = vld [vmem:[%s741] sm:$0x1]
      %v1658 = vpack.c.bf16 %v1640, %v1640
      %v1660 = vlaneseq
      %v1661 = vshrl.u32 %v1660, 7
      %v1662 = vsub.s32 0, %v1661
      %v1663 = vrot.slane %v1657, %v1662
      %v1681 = vunpack.c.l.b16 %v1641
      %v1682 = vunpack.c.l.b16 %v1642
      %v1683 = vunpack.c.l.b16 %v1643
      %v1684 = vunpack.c.l.b16 %v1644
      %v1685 = vunpack.c.l.b16 %v1645
      %v1686 = vunpack.c.l.b16 %v1646
      %v1687 = vunpack.c.l.b16 %v1647
      %v1688 = vunpack.c.l.b16 %v1648
      %v1689 = vunpack.c.l.b16 %v1649
      %v1690 = vunpack.c.l.b16 %v1650
      %v1691 = vunpack.c.l.b16 %v1651
      %v1692 = vunpack.c.l.b16 %v1652
      %v1693 = vunpack.c.l.b16 %v1653
      %v1694 = vunpack.c.l.b16 %v1654
      %v1695 = vunpack.c.l.b16 %v1655
      %v1696 = vunpack.c.l.b16 %v1656
      %v1697 = vpack.c.b16 %v1682, %v1681
      %v1698 = vpack.c.b16 %v1684, %v1683
      %v1699 = vpack.c.b16 %v1686, %v1685
      %v1700 = vpack.c.b16 %v1688, %v1687
      %v1701 = vpack.c.b16 %v1690, %v1689
      %v1702 = vpack.c.b16 %v1692, %v1691
      %v1703 = vpack.c.b16 %v1694, %v1693
      %v1704 = vpack.c.b16 %v1696, %v1695
      %1713 = vmatprep.subr.bf16.mxu0 0
      %1714 = vmatpush1.bf16.msra.mxu0 %v1697
      %1715 = vmatprep.subr.bf16.mxu0 0
      %1716 = vmatpush1.bf16.msra.mxu0 %v1698
      %1717 = vmatprep.subr.bf16.mxu0 0
      %1718 = vmatpush1.bf16.msra.mxu0 %v1699
      %1719 = vmatprep.subr.bf16.mxu0 0
      %1720 = vmatpush1.bf16.msra.mxu0 %v1700
      %1721 = vmatprep.subr.bf16.mxu0 0
      %1722 = vmatpush1.bf16.msra.mxu0 %v1701
      %1723 = vmatprep.subr.bf16.mxu0 0
      %1724 = vmatpush1.bf16.msra.mxu0 %v1702
      %1725 = vmatprep.subr.bf16.mxu0 0
      %1726 = vmatpush1.bf16.msra.mxu0 %v1703
      %1727 = vmatprep.subr.bf16.mxu0 0
      %1728 = vmatpush1.bf16.msra.mxu0 %v1704
      %1729 = vmatprep.subr.bf16.mxu0 0
      %1730 = vmatpush1.bf16.msra.mxu0 0
      %1731 = vmatprep.subr.bf16.mxu0 0
      %1732 = vmatpush1.bf16.msra.mxu0 0
      %1733 = vmatprep.subr.bf16.mxu0 0
      %1734 = vmatpush1.bf16.msra.mxu0 0
      %1735 = vmatprep.subr.bf16.mxu0 0
      %1736 = vmatpush1.bf16.msra.mxu0 0
      %1737 = vmatprep.subr.bf16.mxu0 0
      %1738 = vmatpush1.bf16.msra.mxu0 0
      %1739 = vmatprep.subr.bf16.mxu0 0
      %1740 = vmatpush1.bf16.msra.mxu0 0
      %1741 = vmatprep.subr.bf16.mxu0 0
      %1742 = vmatpush1.bf16.msra.mxu0 0
      %1743 = vmatprep.subr.bf16.mxu0 0
      %1744 = vmatpush1.bf16.msra.mxu0 0
      %1745 = vmatprep.mubr.bf16.mxu0 0
      %1746 = vmatmul.mubr.bf16.gmra.mrb[0].mxu0 %v1658
      %v1747 = vpop.f32.mrb[0].mxu0
      %v1748 = vadd.f32 %v1663, %v1747
      %v1749 = vpop.f32.mrb[0].mxu0
      %v1750 = vpop.f32.mrb[0].mxu0
      %v1751 = vpop.f32.mrb[0].mxu0
      %1752 = vdwg.mxu0
      %v1753 = vadd.f32 %v1536, %v1748
      %1754 = vst.msk [vmem:[#allocation2] sm:$0xff] %vm768, %v1753
      %p1755 = scmp.eq.s32.totalorder %s31, 1
      // Predicated region
      $region89: #{text_encoder_forward.2} parent=79 // pred_check
        %p1756 = pneg %p1755
      $region90: #{text_encoder_forward.2} parent=79 // pred_check_branch
        %1758 = sbr.rel (%p1756) target = $region92
      $region91: #{text_encoder_forward.2} parent=79 // pred_region
        %1759 = vst.msk [vmem:[%s745] sm:$0xff] %vm768, %v1753
      $region92: #{text_encoder_forward.2} parent=79 // pred_fallthru
        _
      %p1760 = scmp.lt.s32.totalorder %s30, 1
      %s1761 = scalar_select %p1760, %s30, 1
      %s1762 = smul.addr %s1761, 8
      %s1763 = scalar_lea.vmem %s15, %s1762
      // Predicated region
      $region93: #{text_encoder_forward.2} parent=79 // pred_check
        %p1764 = pneg %p451
      $region94: #{text_encoder_forward.2} parent=79 // pred_check_branch
        %1766 = sbr.rel (%p1764) target = $region96
      $region95: #{text_encoder_forward.2} parent=79 // pred_region
        _
      $region96: #{text_encoder_forward.2} parent=79 // pred_fallthru
        _
    $region80: #{text_encoder_forward.2} parent=5 // pred_fallthru
      _
    %p1767 = scmp.le.s32.totalorder 2, %s21
    // Predicated region
    $region97: #{text_encoder_forward.2} parent=5 // pred_check
      %p1768 = pneg %p1767
    $region98: #{text_encoder_forward.2} parent=5 // pred_check_branch
      %1770 = sbr.rel (%p1768) target = $region100
    $region99: #{text_encoder_forward.2} parent=5 // pred_region
      %s1771 = ssub.s32 %s21, 2
      // Predicated region
      $region101: #{text_encoder_forward.2} parent=99 // pred_check
        %p1772 = pneg %p457
      $region102: #{text_encoder_forward.2} parent=99 // pred_check_branch
        %1774 = sbr.rel (%p1772) target = $region104
      $region103: #{text_encoder_forward.2} parent=99 // pred_region
        %p1775 = scmp.lt.s32.totalorder %s32, 1
        %s1776 = scalar_select %p1775, %s32, 1
        %s1777 = smul.addr %s1776, 8
        %s1778 = scalar_lea.vmem %s15, %s1777
      $region104: #{text_encoder_forward.2} parent=99 // pred_fallthru
        _
    $region100: #{text_encoder_forward.2} parent=5 // pred_fallthru
      _
  $region6: #{text_encoder_forward.2} parent=0 // loop_footer
    %s25 = sadd.s32 1, %s21
  $region7: #{text_encoder_forward.2} parent=0 // loop_footer_branch
    %20 = sbr.rel target = $region3
  $region8: #{text_encoder_forward.2} parent=0 // loop_exit
    _

</llo_original>
